<compile_context>
chip_gen: v7x
topology: tpu7x:2x2x1
jax: 0.10.0
libtpu: 0.0.40
codegen_flags: <defaults>
</compile_context>

<pallas_src>
import jax
import jax.numpy as jnp
from jax.experimental import pallas as pl
from jax.experimental.pallas import tpu as pltpu

H = 64                    # embedding dim == LSTM hidden size
GL = 128                  # lane stride between gates (i,f,g,o) -> 128-aligned slices
GATES_PAD = 4 * GL        # 512
VOCAB = 41
VOCAB_PAD = 128           # one-hot lane width (token ids < 41 < 128)
OUT_PAD = 128             # fc output padded to a full vreg lane width
BT = 8                    # batch rows per grid step (one sublane group)


def _sigmoid(x):
    # sigmoid(x) == 0.5*tanh(0.5*x) + 0.5 : one EUP tanh instead of exp + divide.
    return 0.5 * jnp.tanh(0.5 * x) + 0.5


def _smiles_lstm_kernel(tok_ref, tok_last_ref, len_ref, mask_ref,
                        wg_f_ref, w_hh_ref, b_f_ref,
                        wg_b_ref, b_b_ref,
                        w_fc_f_ref, w_fc_b_ref, b_fc_ref,
                        out_ref, gx_ref):
    bt = len_ref.shape[0]                          # batch-tile rows (8)
    t_steps = tok_ref.shape[0] // bt               # static timestep count

    # ---- fused embedding + forward input projection, hoisted out of the
    #      recurrence: one-hot(tokens) @ (embed @ W_ih) -> ONE MXU matmul.
    tok = tok_ref[...]                                                 # [T*BT, 1] int32
    lane = jax.lax.broadcasted_iota(jnp.int32, (t_steps * bt, VOCAB_PAD), 1)
    onehot = jnp.where(tok == lane, 1.0, 0.0).astype(jnp.bfloat16)     # exact in bf16
    gx_ref[...] = jnp.dot(onehot, wg_f_ref[...],
                          preferred_element_type=jnp.float32) + b_f_ref[...]

    lens = len_ref[...]                                                # [BT, 1] int32
    w_hh = w_hh_ref[...]                                               # [H, 512] bf16

    def step(t, carry):
        h, c = carry
        start = pl.multiple_of(t * bt, bt)                             # aligned sublane slice
        gates = gx_ref[pl.ds(start, bt), :] + jnp.dot(
            h.astype(jnp.bfloat16), w_hh, preferred_element_type=jnp.float32)
        i = _sigmoid(gates[:, 0 * GL:0 * GL + H])                      # 128-aligned slices
        f = _sigmoid(gates[:, 1 * GL:1 * GL + H])
        g = jnp.tanh(gates[:, 2 * GL:2 * GL + H])
        o = _sigmoid(gates[:, 3 * GL:3 * GL + H])
        c_new = f * c + i * g
        h_new = o * jnp.tanh(c_new)
        valid = t < lens                                               # packed-sequence gate
        return (jnp.where(valid, h_new, h), jnp.where(valid, c_new, c))

    h0 = jnp.zeros((bt, H), jnp.float32)
    c0 = jnp.zeros((bt, H), jnp.float32)
    unroll = True if t_steps <= 16 else 8                              # bound code size
    h_fwd, _ = jax.lax.fori_loop(0, t_steps, step, (h0, c0), unroll=unroll)

    # ---- reverse direction: out[:, -1, :] is the reverse direction's FIRST step
    #      (h_prev = c_prev = 0), so a single cell is exact (w_hh_b contributes 0).
    lane2 = jax.lax.broadcasted_iota(jnp.int32, (bt, VOCAB_PAD), 1)
    oh_last = jnp.where(tok_last_ref[...] == lane2, 1.0, 0.0).astype(jnp.bfloat16)
    gb = jnp.dot(oh_last, wg_b_ref[...],
                 preferred_element_type=jnp.float32) + b_b_ref[...]
    ib = _sigmoid(gb[:, 0 * GL:0 * GL + H])
    gg = jnp.tanh(gb[:, 2 * GL:2 * GL + H])
    ob = _sigmoid(gb[:, 3 * GL:3 * GL + H])
    h_bwd = ob * jnp.tanh(ib * gg)                                     # f * c_prev == 0

    # rows shorter than max(len) are zero padding in out[:, -1, :]
    m = mask_ref[...]                                                  # [BT, 1] f32
    out_ref[...] = (
        jnp.dot(h_fwd * m, w_fc_f_ref[...], preferred_element_type=jnp.float32)
        + jnp.dot(h_bwd * m, w_fc_b_ref[...], preferred_element_type=jnp.float32)
        + b_fc_ref[...])


def _expand_gate_cols(w):
    """PyTorch [4H, K] gate weight -> [K, 4*GL] with gate k at lanes [k*GL, k*GL+H)."""
    k_in = w.shape[1]
    wt = w.T.reshape(k_in, 4, H)
    wt = jnp.pad(wt, ((0, 0), (0, 0), (0, GL - H)))
    return wt.reshape(k_in, GATES_PAD)


def _expand_gate_bias(b_ih, b_hh):
    b = (b_ih + b_hh).reshape(4, H)
    b = jnp.pad(b, ((0, 0), (0, GL - H)))
    return b.reshape(1, GATES_PAD)


@jax.jit
def smiles_net_forward(tokens, lengths, params):
    """y = fc(pad_packed(BiLSTM(pack(embed(tokens), lengths)))[:, -1, :])."""
    b, t = tokens.shape
    bp = -(-b // BT) * BT                                              # pad batch to tiles of 8
    n_tiles = bp // BT

    tokens_p = jnp.pad(tokens.astype(jnp.int32), ((0, bp - b), (0, 0)))
    len_p = jnp.pad(lengths.astype(jnp.int32), (0, bp - b))            # pad rows: length 0
    t_eff = jnp.max(len_p)                                             # pad_packed output length
    last = t_eff - 1
    mask_p = (len_p == t_eff).astype(jnp.float32)[:, None]             # [bp, 1]

    # time-major token ids grouped per batch tile: row = t*BT + local_b
    tok_tiles = (tokens_p.T.reshape(t, n_tiles, BT)
                 .transpose(1, 0, 2).reshape(n_tiles, t * BT, 1))
    tok_last = jnp.take(tokens_p, last, axis=1)[:, None]               # [bp, 1]

    # ---- fold the embedding table into the input projections (one-hot @ fused W)
    embed_pad = jnp.zeros((VOCAB_PAD, H), jnp.float32).at[:VOCAB].set(params["embed"])
    wg_f = (embed_pad @ _expand_gate_cols(params["w_ih_f"])).astype(jnp.bfloat16)
    wg_b = (embed_pad @ _expand_gate_cols(params["w_ih_b"])).astype(jnp.bfloat16)
    w_hh_f = _expand_gate_cols(params["w_hh_f"]).astype(jnp.bfloat16)
    b_f = _expand_gate_bias(params["b_ih_f"], params["b_hh_f"])        # [1, 512] f32
    b_b = _expand_gate_bias(params["b_ih_b"], params["b_hh_b"])
    # NOTE: w_hh_b contributes exactly zero (reverse step starts from h=0) -> unused.

    w_fc_t = jnp.pad(params["w_fc"].T,
                     ((0, 0), (0, OUT_PAD - params["w_fc"].shape[0])))  # [128, 128]
    w_fc_f, w_fc_b = w_fc_t[:H], w_fc_t[H:]                             # [64, 128] each
    b_fc = jnp.pad(params["b_fc"], (0, OUT_PAD - params["b_fc"].shape[0]))[None, :]

    wide = lambda shape: pl.BlockSpec(shape, lambda i: (0,) * len(shape))
    out_pad = pl.pallas_call(
        _smiles_lstm_kernel,
        out_shape=jax.ShapeDtypeStruct((bp, OUT_PAD), jnp.float32),
        grid=(n_tiles,),
        in_specs=[
            pl.BlockSpec((None, t * BT, 1), lambda i: (i, 0, 0)),      # token ids (time-major tile)
            pl.BlockSpec((BT, 1), lambda i: (i, 0)),                   # last-timestep token ids
            pl.BlockSpec((BT, 1), lambda i: (i, 0)),                   # sequence lengths
            pl.BlockSpec((BT, 1), lambda i: (i, 0)),                   # full-length row mask
            wide((VOCAB_PAD, GATES_PAD)),                              # fused embed->gates fwd
            wide((H, GATES_PAD)),                                      # recurrent weights fwd
            wide((1, GATES_PAD)),                                      # fused bias fwd
            wide((VOCAB_PAD, GATES_PAD)),                              # fused embed->gates bwd
            wide((1, GATES_PAD)),                                      # fused bias bwd
            wide((H, OUT_PAD)), wide((H, OUT_PAD)), wide((1, OUT_PAD)),
        ],
        out_specs=pl.BlockSpec((BT, OUT_PAD), lambda i: (i, 0)),
        scratch_shapes=[pltpu.VMEM((t * BT, GATES_PAD), jnp.float32)],
        compiler_params=pltpu.CompilerParams(
            dimension_semantics=("parallel",)),                        # batch tiles -> 2nd TC on v7x
    )(tok_tiles, tok_last, len_p[:, None], mask_p,
      wg_f, w_hh_f, b_f, wg_b, b_b, w_fc_f, w_fc_b, b_fc)

    return out_pad[:b, :H]


# ------------------------- pure-JAX f32 reference ---------------------------
def _lstm_cell(x_t, h, c, w_ih, w_hh, b_ih, b_hh):
    g = x_t @ w_ih.T + h @ w_hh.T + b_ih + b_hh
    i, f, gg, o = jnp.split(g, 4, axis=-1)
    i, f, o = jax.nn.sigmoid(i), jax.nn.sigmoid(f), jax.nn.sigmoid(o)
    c = f * c + i * jnp.tanh(gg)
    return o * jnp.tanh(c), c


def smiles_net_ref(tokens, lengths, params):
    b, _ = tokens.shape
    x = params["embed"][tokens]                                        # [B, T, 64]
    t_eff = int(jnp.max(lengths))
    h = c = jnp.zeros((b, H), jnp.float32)
    for tt in range(t_eff):
        h_new, c_new = _lstm_cell(x[:, tt], h, c, params["w_ih_f"], params["w_hh_f"],
                                  params["b_ih_f"], params["b_hh_f"])
        valid = (tt < lengths)[:, None]
        h = jnp.where(valid, h_new, h)
        c = jnp.where(valid, c_new, c)
    z = jnp.zeros((b, H), jnp.float32)
    h_b, _ = _lstm_cell(x[:, t_eff - 1], z, z, params["w_ih_b"], params["w_hh_b"],
                        params["b_ih_b"], params["b_hh_b"])
    full = (lengths == t_eff)[:, None]
    out_last = jnp.concatenate([jnp.where(full, h, 0.0), jnp.where(full, h_b, 0.0)], -1)
    return out_last @ params["w_fc"].T + params["b_fc"]


if __name__ == "__main__":
    key = jax.random.PRNGKey(0)
    ks = jax.random.split(key, 12)
    B, T = 2, 8

    def rnd(k, shape, scale=0.1):
        return jax.random.normal(k, shape, jnp.float32) * scale

    embed = rnd(ks[0], (VOCAB, H)).at[0].set(0.0)                      # padding_idx=0
    params = dict(
        embed=embed,
        w_ih_f=rnd(ks[1], (4 * H, H)), w_hh_f=rnd(ks[2], (4 * H, H)),
        b_ih_f=rnd(ks[3], (4 * H,), 0.01), b_hh_f=rnd(ks[4], (4 * H,), 0.01),
        w_ih_b=rnd(ks[5], (4 * H, H)), w_hh_b=rnd(ks[6], (4 * H, H)),
        b_ih_b=rnd(ks[7], (4 * H,), 0.01), b_hh_b=rnd(ks[8], (4 * H,), 0.01),
        w_fc=rnd(ks[9], (H, 2 * H)), b_fc=rnd(ks[10], (H,), 0.01),
    )

    lengths = jnp.array([8, 5], jnp.int32)                             # variable-length batch
    tokens = jax.random.randint(ks[11], (B, T), 1, VOCAB)
    tokens = jnp.where(jnp.arange(T)[None, :] < lengths[:, None], tokens, 0)

    y = jax.block_until_ready(smiles_net_forward(tokens, lengths, params))
    assert y.shape == (B, H) and y.dtype == jnp.float32

    # tolerance-asserted f32 reference (difference is bf16 weight/activation rounding)
    y_ref = jax.block_until_ready(smiles_net_ref(tokens, lengths, params))
    err = float(jnp.max(jnp.abs(y - y_ref)))
    assert err < 2e-2, f"max |err| vs f32 reference: {err}"
    print("KERNEL_OK")
</pallas_src>

<mosaic_0001>
module attributes {stable_mosaic.version = 11 : i64} {
  func.func @_smiles_lstm_kernel(%arg0: i32, %arg1: memref<1x64x1xi32, #tpu.memory_space<vmem>>, %arg2: memref<8x1xi32, #tpu.memory_space<vmem>>, %arg3: memref<8x1xi32, #tpu.memory_space<vmem>>, %arg4: memref<8x1xf32, #tpu.memory_space<vmem>>, %arg5: memref<128x512xbf16, #tpu.memory_space<vmem>>, %arg6: memref<64x512xbf16, #tpu.memory_space<vmem>>, %arg7: memref<1x512xf32, #tpu.memory_space<vmem>>, %arg8: memref<128x512xbf16, #tpu.memory_space<vmem>>, %arg9: memref<1x512xf32, #tpu.memory_space<vmem>>, %arg10: memref<64x128xf32, #tpu.memory_space<vmem>>, %arg11: memref<64x128xf32, #tpu.memory_space<vmem>>, %arg12: memref<1x128xf32, #tpu.memory_space<vmem>>, %arg13: memref<8x128xf32, #tpu.memory_space<vmem>>, %arg14: memref<64x512xf32, #tpu.memory_space<vmem>>) attributes {dimension_semantics = [#tpu.dimension_semantics<parallel>], iteration_bounds = array<i64: 1>, scalar_prefetch = 0 : i64, scratch_operands = 1 : i64, tpu.core_type = #tpu.core_type<tc>, window_params = [{transform_indices = @transform_0, window_bounds = array<i64: 1, 64, 1>}, {transform_indices = @transform_1, window_bounds = array<i64: 8, 1>}, {transform_indices = @transform_2, window_bounds = array<i64: 8, 1>}, {transform_indices = @transform_3, window_bounds = array<i64: 8, 1>}, {pipeline_mode = #tpu.pipeline_mode<synchronous>, transform_indices = @transform_4, window_bounds = array<i64: 128, 512>}, {pipeline_mode = #tpu.pipeline_mode<synchronous>, transform_indices = @transform_5, window_bounds = array<i64: 64, 512>}, {pipeline_mode = #tpu.pipeline_mode<synchronous>, transform_indices = @transform_6, window_bounds = array<i64: 1, 512>}, {pipeline_mode = #tpu.pipeline_mode<synchronous>, transform_indices = @transform_7, window_bounds = array<i64: 128, 512>}, {pipeline_mode = #tpu.pipeline_mode<synchronous>, transform_indices = @transform_8, window_bounds = array<i64: 1, 512>}, {pipeline_mode = #tpu.pipeline_mode<synchronous>, transform_indices = @transform_9, window_bounds = array<i64: 64, 128>}, {pipeline_mode = #tpu.pipeline_mode<synchronous>, transform_indices = @transform_10, window_bounds = array<i64: 64, 128>}, {pipeline_mode = #tpu.pipeline_mode<synchronous>, transform_indices = @transform_11, window_bounds = array<i64: 1, 128>}, {transform_indices = @transform_12, window_bounds = array<i64: 8, 128>}]} {
    %c0 = arith.constant 0 : index
    %c0_0 = arith.constant 0 : index
    %c0_1 = arith.constant 0 : index
    %0 = vector.load %arg1[%c0, %c0_0, %c0_1] : memref<1x64x1xi32, #tpu.memory_space<vmem>>, vector<1x64x1xi32>
    %1 = vector.shape_cast %0 : vector<1x64x1xi32> to vector<64x1xi32>
    %2 = tpu.iota {dimensions = array<i32: 1>} : vector<64x128xi32>
    %3 = vector.broadcast %1 : vector<64x1xi32> to vector<64x128xi32>
    %4 = arith.cmpi eq, %3, %2 : vector<64x128xi32>
    %cst = arith.constant 1.000000e+00 : f32
    %cst_2 = arith.constant 0.000000e+00 : f32
    %5 = vector.broadcast %cst : f32 to vector<64x128xf32>
    %6 = vector.broadcast %cst_2 : f32 to vector<64x128xf32>
    %7 = arith.select %4, %5, %6 : vector<64x128xi1>, vector<64x128xf32>
    %8 = arith.truncf %7 : vector<64x128xf32> to vector<64x128xbf16>
    %c0_3 = arith.constant 0 : index
    %c0_4 = arith.constant 0 : index
    %9 = vector.load %arg5[%c0_3, %c0_4] : memref<128x512xbf16, #tpu.memory_space<vmem>>, vector<128x512xbf16>
    %cst_5 = arith.constant dense<0.000000e+00> : vector<64x512xf32>
    %10 = tpu.matmul %8, %9, %cst_5 {dimension_numbers = #tpu.dot_dimension_numbers<[1], [0], [0], [1], [0, 0, 1, 1], [], []>} : vector<64x128xbf16>, vector<128x512xbf16>, vector<64x512xf32> -> vector<64x512xf32>
    %c0_6 = arith.constant 0 : index
    %c0_7 = arith.constant 0 : index
    %11 = vector.load %arg7[%c0_6, %c0_7] : memref<1x512xf32, #tpu.memory_space<vmem>>, vector<1x512xf32>
    %12 = vector.broadcast %11 : vector<1x512xf32> to vector<64x512xf32>
    %13 = arith.addf %10, %12 : vector<64x512xf32>
    %c0_8 = arith.constant 0 : index
    %c0_9 = arith.constant 0 : index
    %14 = vector.load %arg14[%c0_8, %c0_9] : memref<64x512xf32, #tpu.memory_space<vmem>>, vector<64x512xf32>
    tpu.vector_store %arg14[%c0_8, %c0_9], %13 {strides = array<i32>} : memref<64x512xf32, #tpu.memory_space<vmem>>, vector<64x512xf32>,
    %c0_10 = arith.constant 0 : index
    %c0_11 = arith.constant 0 : index
    %15 = vector.load %arg3[%c0_10, %c0_11] : memref<8x1xi32, #tpu.memory_space<vmem>>, vector<8x1xi32>
    %c0_12 = arith.constant 0 : index
    %c0_13 = arith.constant 0 : index
    %16 = vector.load %arg6[%c0_12, %c0_13] : memref<64x512xbf16, #tpu.memory_space<vmem>>, vector<64x512xbf16>
    %cst_14 = arith.constant 0.000000e+00 : f32
    %17 = vector.broadcast %cst_14 : f32 to vector<8x64xf32>
    %cst_15 = arith.constant 0.000000e+00 : f32
    %18 = vector.broadcast %cst_15 : f32 to vector<8x64xf32>
    %c0_i32 = arith.constant 0 : i32
    %c8_i32 = arith.constant 8 : i32
    %19 = arith.muli %c0_i32, %c8_i32 : i32
    %20 = tpu.assume_multiple %19, 8 : i32
    %21 = arith.index_cast %20 : i32 to index
    %c0_16 = arith.constant 0 : index
    %22 = vector.load %arg14[%21, %c0_16] : memref<64x512xf32, #tpu.memory_space<vmem>>, vector<8x512xf32>
    %23 = arith.truncf %17 : vector<8x64xf32> to vector<8x64xbf16>
    %cst_17 = arith.constant dense<0.000000e+00> : vector<8x512xf32>
    %24 = tpu.matmul %23, %16, %cst_17 {dimension_numbers = #tpu.dot_dimension_numbers<[1], [0], [0], [1], [0, 0, 1, 1], [], []>} : vector<8x64xbf16>, vector<64x512xbf16>, vector<8x512xf32> -> vector<8x512xf32>
    %25 = arith.addf %22, %24 : vector<8x512xf32>
    %26 = vector.extract_strided_slice %25 {offsets = [0, 0], sizes = [8, 64], strides = [1, 1]} : vector<8x512xf32> to vector<8x64xf32>
    %cst_18 = arith.constant 5.000000e-01 : f32
    %27 = vector.broadcast %cst_18 : f32 to vector<8x64xf32>
    %28 = arith.mulf %27, %26 : vector<8x64xf32>
    %29 = math.tanh %28 : vector<8x64xf32>
    %cst_19 = arith.constant 5.000000e-01 : f32
    %30 = vector.broadcast %cst_19 : f32 to vector<8x64xf32>
    %31 = arith.mulf %30, %29 : vector<8x64xf32>
    %cst_20 = arith.constant 5.000000e-01 : f32
    %32 = vector.broadcast %cst_20 : f32 to vector<8x64xf32>
    %33 = arith.addf %31, %32 : vector<8x64xf32>
    %34 = vector.extract_strided_slice %25 {offsets = [0, 128], sizes = [8, 64], strides = [1, 1]} : vector<8x512xf32> to vector<8x64xf32>
    %cst_21 = arith.constant 5.000000e-01 : f32
    %35 = vector.broadcast %cst_21 : f32 to vector<8x64xf32>
    %36 = arith.mulf %35, %34 : vector<8x64xf32>
    %37 = math.tanh %36 : vector<8x64xf32>
    %cst_22 = arith.constant 5.000000e-01 : f32
    %38 = vector.broadcast %cst_22 : f32 to vector<8x64xf32>
    %39 = arith.mulf %38, %37 : vector<8x64xf32>
    %cst_23 = arith.constant 5.000000e-01 : f32
    %40 = vector.broadcast %cst_23 : f32 to vector<8x64xf32>
    %41 = arith.addf %39, %40 : vector<8x64xf32>
    %42 = vector.extract_strided_slice %25 {offsets = [0, 256], sizes = [8, 64], strides = [1, 1]} : vector<8x512xf32> to vector<8x64xf32>
    %43 = math.tanh %42 : vector<8x64xf32>
    %44 = vector.extract_strided_slice %25 {offsets = [0, 384], sizes = [8, 64], strides = [1, 1]} : vector<8x512xf32> to vector<8x64xf32>
    %cst_24 = arith.constant 5.000000e-01 : f32
    %45 = vector.broadcast %cst_24 : f32 to vector<8x64xf32>
    %46 = arith.mulf %45, %44 : vector<8x64xf32>
    %47 = math.tanh %46 : vector<8x64xf32>
    %cst_25 = arith.constant 5.000000e-01 : f32
    %48 = vector.broadcast %cst_25 : f32 to vector<8x64xf32>
    %49 = arith.mulf %48, %47 : vector<8x64xf32>
    %cst_26 = arith.constant 5.000000e-01 : f32
    %50 = vector.broadcast %cst_26 : f32 to vector<8x64xf32>
    %51 = arith.addf %49, %50 : vector<8x64xf32>
    %52 = arith.mulf %41, %18 : vector<8x64xf32>
    %53 = arith.mulf %33, %43 : vector<8x64xf32>
    %54 = arith.addf %52, %53 : vector<8x64xf32>
    %55 = math.tanh %54 : vector<8x64xf32>
    %56 = arith.mulf %51, %55 : vector<8x64xf32>
    %57 = vector.broadcast %c0_i32 : i32 to vector<8x1xi32>
    %58 = arith.cmpi slt, %57, %15 : vector<8x1xi32>
    %59 = vector.shape_cast %58 : vector<8x1xi1> to vector<8x1xi1>
    %60 = vector.broadcast %59 : vector<8x1xi1> to vector<8x64xi1>
    %61 = arith.select %60, %56, %17 : vector<8x64xi1>, vector<8x64xf32>
    %62 = vector.shape_cast %58 : vector<8x1xi1> to vector<8x1xi1>
    %63 = vector.broadcast %62 : vector<8x1xi1> to vector<8x64xi1>
    %64 = arith.select %63, %54, %18 : vector<8x64xi1>, vector<8x64xf32>
    %c1_i32 = arith.constant 1 : i32
    %c8_i32_27 = arith.constant 8 : i32
    %65 = arith.muli %c1_i32, %c8_i32_27 : i32
    %66 = tpu.assume_multiple %65, 8 : i32
    %67 = arith.index_cast %66 : i32 to index
    %c0_28 = arith.constant 0 : index
    %68 = vector.load %arg14[%67, %c0_28] : memref<64x512xf32, #tpu.memory_space<vmem>>, vector<8x512xf32>
    %69 = arith.truncf %61 : vector<8x64xf32> to vector<8x64xbf16>
    %cst_29 = arith.constant dense<0.000000e+00> : vector<8x512xf32>
    %70 = tpu.matmul %69, %16, %cst_29 {dimension_numbers = #tpu.dot_dimension_numbers<[1], [0], [0], [1], [0, 0, 1, 1], [], []>} : vector<8x64xbf16>, vector<64x512xbf16>, vector<8x512xf32> -> vector<8x512xf32>
    %71 = arith.addf %68, %70 : vector<8x512xf32>
    %72 = vector.extract_strided_slice %71 {offsets = [0, 0], sizes = [8, 64], strides = [1, 1]} : vector<8x512xf32> to vector<8x64xf32>
    %cst_30 = arith.constant 5.000000e-01 : f32
    %73 = vector.broadcast %cst_30 : f32 to vector<8x64xf32>
    %74 = arith.mulf %73, %72 : vector<8x64xf32>
    %75 = math.tanh %74 : vector<8x64xf32>
    %cst_31 = arith.constant 5.000000e-01 : f32
    %76 = vector.broadcast %cst_31 : f32 to vector<8x64xf32>
    %77 = arith.mulf %76, %75 : vector<8x64xf32>
    %cst_32 = arith.constant 5.000000e-01 : f32
    %78 = vector.broadcast %cst_32 : f32 to vector<8x64xf32>
    %79 = arith.addf %77, %78 : vector<8x64xf32>
    %80 = vector.extract_strided_slice %71 {offsets = [0, 128], sizes = [8, 64], strides = [1, 1]} : vector<8x512xf32> to vector<8x64xf32>
    %cst_33 = arith.constant 5.000000e-01 : f32
    %81 = vector.broadcast %cst_33 : f32 to vector<8x64xf32>
    %82 = arith.mulf %81, %80 : vector<8x64xf32>
    %83 = math.tanh %82 : vector<8x64xf32>
    %cst_34 = arith.constant 5.000000e-01 : f32
    %84 = vector.broadcast %cst_34 : f32 to vector<8x64xf32>
    %85 = arith.mulf %84, %83 : vector<8x64xf32>
    %cst_35 = arith.constant 5.000000e-01 : f32
    %86 = vector.broadcast %cst_35 : f32 to vector<8x64xf32>
    %87 = arith.addf %85, %86 : vector<8x64xf32>
    %88 = vector.extract_strided_slice %71 {offsets = [0, 256], sizes = [8, 64], strides = [1, 1]} : vector<8x512xf32> to vector<8x64xf32>
    %89 = math.tanh %88 : vector<8x64xf32>
    %90 = vector.extract_strided_slice %71 {offsets = [0, 384], sizes = [8, 64], strides = [1, 1]} : vector<8x512xf32> to vector<8x64xf32>
    %cst_36 = arith.constant 5.000000e-01 : f32
    %91 = vector.broadcast %cst_36 : f32 to vector<8x64xf32>
    %92 = arith.mulf %91, %90 : vector<8x64xf32>
    %93 = math.tanh %92 : vector<8x64xf32>
    %cst_37 = arith.constant 5.000000e-01 : f32
    %94 = vector.broadcast %cst_37 : f32 to vector<8x64xf32>
    %95 = arith.mulf %94, %93 : vector<8x64xf32>
    %cst_38 = arith.constant 5.000000e-01 : f32
    %96 = vector.broadcast %cst_38 : f32 to vector<8x64xf32>
    %97 = arith.addf %95, %96 : vector<8x64xf32>
    %98 = arith.mulf %87, %64 : vector<8x64xf32>
    %99 = arith.mulf %79, %89 : vector<8x64xf32>
    %100 = arith.addf %98, %99 : vector<8x64xf32>
    %101 = math.tanh %100 : vector<8x64xf32>
    %102 = arith.mulf %97, %101 : vector<8x64xf32>
    %103 = vector.broadcast %c1_i32 : i32 to vector<8x1xi32>
    %104 = arith.cmpi slt, %103, %15 : vector<8x1xi32>
    %105 = vector.shape_cast %104 : vector<8x1xi1> to vector<8x1xi1>
    %106 = vector.broadcast %105 : vector<8x1xi1> to vector<8x64xi1>
    %107 = arith.select %106, %102, %61 : vector<8x64xi1>, vector<8x64xf32>
    %108 = vector.shape_cast %104 : vector<8x1xi1> to vector<8x1xi1>
    %109 = vector.broadcast %108 : vector<8x1xi1> to vector<8x64xi1>
    %110 = arith.select %109, %100, %64 : vector<8x64xi1>, vector<8x64xf32>
    %c2_i32 = arith.constant 2 : i32
    %c8_i32_39 = arith.constant 8 : i32
    %111 = arith.muli %c2_i32, %c8_i32_39 : i32
    %112 = tpu.assume_multiple %111, 8 : i32
    %113 = arith.index_cast %112 : i32 to index
    %c0_40 = arith.constant 0 : index
    %114 = vector.load %arg14[%113, %c0_40] : memref<64x512xf32, #tpu.memory_space<vmem>>, vector<8x512xf32>
    %115 = arith.truncf %107 : vector<8x64xf32> to vector<8x64xbf16>
    %cst_41 = arith.constant dense<0.000000e+00> : vector<8x512xf32>
    %116 = tpu.matmul %115, %16, %cst_41 {dimension_numbers = #tpu.dot_dimension_numbers<[1], [0], [0], [1], [0, 0, 1, 1], [], []>} : vector<8x64xbf16>, vector<64x512xbf16>, vector<8x512xf32> -> vector<8x512xf32>
    %117 = arith.addf %114, %116 : vector<8x512xf32>
    %118 = vector.extract_strided_slice %117 {offsets = [0, 0], sizes = [8, 64], strides = [1, 1]} : vector<8x512xf32> to vector<8x64xf32>
    %cst_42 = arith.constant 5.000000e-01 : f32
    %119 = vector.broadcast %cst_42 : f32 to vector<8x64xf32>
    %120 = arith.mulf %119, %118 : vector<8x64xf32>
    %121 = math.tanh %120 : vector<8x64xf32>
    %cst_43 = arith.constant 5.000000e-01 : f32
    %122 = vector.broadcast %cst_43 : f32 to vector<8x64xf32>
    %123 = arith.mulf %122, %121 : vector<8x64xf32>
    %cst_44 = arith.constant 5.000000e-01 : f32
    %124 = vector.broadcast %cst_44 : f32 to vector<8x64xf32>
    %125 = arith.addf %123, %124 : vector<8x64xf32>
    %126 = vector.extract_strided_slice %117 {offsets = [0, 128], sizes = [8, 64], strides = [1, 1]} : vector<8x512xf32> to vector<8x64xf32>
    %cst_45 = arith.constant 5.000000e-01 : f32
    %127 = vector.broadcast %cst_45 : f32 to vector<8x64xf32>
    %128 = arith.mulf %127, %126 : vector<8x64xf32>
    %129 = math.tanh %128 : vector<8x64xf32>
    %cst_46 = arith.constant 5.000000e-01 : f32
    %130 = vector.broadcast %cst_46 : f32 to vector<8x64xf32>
    %131 = arith.mulf %130, %129 : vector<8x64xf32>
    %cst_47 = arith.constant 5.000000e-01 : f32
    %132 = vector.broadcast %cst_47 : f32 to vector<8x64xf32>
    %133 = arith.addf %131, %132 : vector<8x64xf32>
    %134 = vector.extract_strided_slice %117 {offsets = [0, 256], sizes = [8, 64], strides = [1, 1]} : vector<8x512xf32> to vector<8x64xf32>
    %135 = math.tanh %134 : vector<8x64xf32>
    %136 = vector.extract_strided_slice %117 {offsets = [0, 384], sizes = [8, 64], strides = [1, 1]} : vector<8x512xf32> to vector<8x64xf32>
    %cst_48 = arith.constant 5.000000e-01 : f32
    %137 = vector.broadcast %cst_48 : f32 to vector<8x64xf32>
    %138 = arith.mulf %137, %136 : vector<8x64xf32>
    %139 = math.tanh %138 : vector<8x64xf32>
    %cst_49 = arith.constant 5.000000e-01 : f32
    %140 = vector.broadcast %cst_49 : f32 to vector<8x64xf32>
    %141 = arith.mulf %140, %139 : vector<8x64xf32>
    %cst_50 = arith.constant 5.000000e-01 : f32
    %142 = vector.broadcast %cst_50 : f32 to vector<8x64xf32>
    %143 = arith.addf %141, %142 : vector<8x64xf32>
    %144 = arith.mulf %133, %110 : vector<8x64xf32>
    %145 = arith.mulf %125, %135 : vector<8x64xf32>
    %146 = arith.addf %144, %145 : vector<8x64xf32>
    %147 = math.tanh %146 : vector<8x64xf32>
    %148 = arith.mulf %143, %147 : vector<8x64xf32>
    %149 = vector.broadcast %c2_i32 : i32 to vector<8x1xi32>
    %150 = arith.cmpi slt, %149, %15 : vector<8x1xi32>
    %151 = vector.shape_cast %150 : vector<8x1xi1> to vector<8x1xi1>
    %152 = vector.broadcast %151 : vector<8x1xi1> to vector<8x64xi1>
    %153 = arith.select %152, %148, %107 : vector<8x64xi1>, vector<8x64xf32>
    %154 = vector.shape_cast %150 : vector<8x1xi1> to vector<8x1xi1>
    %155 = vector.broadcast %154 : vector<8x1xi1> to vector<8x64xi1>
    %156 = arith.select %155, %146, %110 : vector<8x64xi1>, vector<8x64xf32>
    %c3_i32 = arith.constant 3 : i32
    %c8_i32_51 = arith.constant 8 : i32
    %157 = arith.muli %c3_i32, %c8_i32_51 : i32
    %158 = tpu.assume_multiple %157, 8 : i32
    %159 = arith.index_cast %158 : i32 to index
    %c0_52 = arith.constant 0 : index
    %160 = vector.load %arg14[%159, %c0_52] : memref<64x512xf32, #tpu.memory_space<vmem>>, vector<8x512xf32>
    %161 = arith.truncf %153 : vector<8x64xf32> to vector<8x64xbf16>
    %cst_53 = arith.constant dense<0.000000e+00> : vector<8x512xf32>
    %162 = tpu.matmul %161, %16, %cst_53 {dimension_numbers = #tpu.dot_dimension_numbers<[1], [0], [0], [1], [0, 0, 1, 1], [], []>} : vector<8x64xbf16>, vector<64x512xbf16>, vector<8x512xf32> -> vector<8x512xf32>
    %163 = arith.addf %160, %162 : vector<8x512xf32>
    %164 = vector.extract_strided_slice %163 {offsets = [0, 0], sizes = [8, 64], strides = [1, 1]} : vector<8x512xf32> to vector<8x64xf32>
    %cst_54 = arith.constant 5.000000e-01 : f32
    %165 = vector.broadcast %cst_54 : f32 to vector<8x64xf32>
    %166 = arith.mulf %165, %164 : vector<8x64xf32>
    %167 = math.tanh %166 : vector<8x64xf32>
    %cst_55 = arith.constant 5.000000e-01 : f32
    %168 = vector.broadcast %cst_55 : f32 to vector<8x64xf32>
    %169 = arith.mulf %168, %167 : vector<8x64xf32>
    %cst_56 = arith.constant 5.000000e-01 : f32
    %170 = vector.broadcast %cst_56 : f32 to vector<8x64xf32>
    %171 = arith.addf %169, %170 : vector<8x64xf32>
    %172 = vector.extract_strided_slice %163 {offsets = [0, 128], sizes = [8, 64], strides = [1, 1]} : vector<8x512xf32> to vector<8x64xf32>
    %cst_57 = arith.constant 5.000000e-01 : f32
    %173 = vector.broadcast %cst_57 : f32 to vector<8x64xf32>
    %174 = arith.mulf %173, %172 : vector<8x64xf32>
    %175 = math.tanh %174 : vector<8x64xf32>
    %cst_58 = arith.constant 5.000000e-01 : f32
    %176 = vector.broadcast %cst_58 : f32 to vector<8x64xf32>
    %177 = arith.mulf %176, %175 : vector<8x64xf32>
    %cst_59 = arith.constant 5.000000e-01 : f32
    %178 = vector.broadcast %cst_59 : f32 to vector<8x64xf32>
    %179 = arith.addf %177, %178 : vector<8x64xf32>
    %180 = vector.extract_strided_slice %163 {offsets = [0, 256], sizes = [8, 64], strides = [1, 1]} : vector<8x512xf32> to vector<8x64xf32>
    %181 = math.tanh %180 : vector<8x64xf32>
    %182 = vector.extract_strided_slice %163 {offsets = [0, 384], sizes = [8, 64], strides = [1, 1]} : vector<8x512xf32> to vector<8x64xf32>
    %cst_60 = arith.constant 5.000000e-01 : f32
    %183 = vector.broadcast %cst_60 : f32 to vector<8x64xf32>
    %184 = arith.mulf %183, %182 : vector<8x64xf32>
    %185 = math.tanh %184 : vector<8x64xf32>
    %cst_61 = arith.constant 5.000000e-01 : f32
    %186 = vector.broadcast %cst_61 : f32 to vector<8x64xf32>
    %187 = arith.mulf %186, %185 : vector<8x64xf32>
    %cst_62 = arith.constant 5.000000e-01 : f32
    %188 = vector.broadcast %cst_62 : f32 to vector<8x64xf32>
    %189 = arith.addf %187, %188 : vector<8x64xf32>
    %190 = arith.mulf %179, %156 : vector<8x64xf32>
    %191 = arith.mulf %171, %181 : vector<8x64xf32>
    %192 = arith.addf %190, %191 : vector<8x64xf32>
    %193 = math.tanh %192 : vector<8x64xf32>
    %194 = arith.mulf %189, %193 : vector<8x64xf32>
    %195 = vector.broadcast %c3_i32 : i32 to vector<8x1xi32>
    %196 = arith.cmpi slt, %195, %15 : vector<8x1xi32>
    %197 = vector.shape_cast %196 : vector<8x1xi1> to vector<8x1xi1>
    %198 = vector.broadcast %197 : vector<8x1xi1> to vector<8x64xi1>
    %199 = arith.select %198, %194, %153 : vector<8x64xi1>, vector<8x64xf32>
    %200 = vector.shape_cast %196 : vector<8x1xi1> to vector<8x1xi1>
    %201 = vector.broadcast %200 : vector<8x1xi1> to vector<8x64xi1>
    %202 = arith.select %201, %192, %156 : vector<8x64xi1>, vector<8x64xf32>
    %c4_i32 = arith.constant 4 : i32
    %c8_i32_63 = arith.constant 8 : i32
    %203 = arith.muli %c4_i32, %c8_i32_63 : i32
    %204 = tpu.assume_multiple %203, 8 : i32
    %205 = arith.index_cast %204 : i32 to index
    %c0_64 = arith.constant 0 : index
    %206 = vector.load %arg14[%205, %c0_64] : memref<64x512xf32, #tpu.memory_space<vmem>>, vector<8x512xf32>
    %207 = arith.truncf %199 : vector<8x64xf32> to vector<8x64xbf16>
    %cst_65 = arith.constant dense<0.000000e+00> : vector<8x512xf32>
    %208 = tpu.matmul %207, %16, %cst_65 {dimension_numbers = #tpu.dot_dimension_numbers<[1], [0], [0], [1], [0, 0, 1, 1], [], []>} : vector<8x64xbf16>, vector<64x512xbf16>, vector<8x512xf32> -> vector<8x512xf32>
    %209 = arith.addf %206, %208 : vector<8x512xf32>
    %210 = vector.extract_strided_slice %209 {offsets = [0, 0], sizes = [8, 64], strides = [1, 1]} : vector<8x512xf32> to vector<8x64xf32>
    %cst_66 = arith.constant 5.000000e-01 : f32
    %211 = vector.broadcast %cst_66 : f32 to vector<8x64xf32>
    %212 = arith.mulf %211, %210 : vector<8x64xf32>
    %213 = math.tanh %212 : vector<8x64xf32>
    %cst_67 = arith.constant 5.000000e-01 : f32
    %214 = vector.broadcast %cst_67 : f32 to vector<8x64xf32>
    %215 = arith.mulf %214, %213 : vector<8x64xf32>
    %cst_68 = arith.constant 5.000000e-01 : f32
    %216 = vector.broadcast %cst_68 : f32 to vector<8x64xf32>
    %217 = arith.addf %215, %216 : vector<8x64xf32>
    %218 = vector.extract_strided_slice %209 {offsets = [0, 128], sizes = [8, 64], strides = [1, 1]} : vector<8x512xf32> to vector<8x64xf32>
    %cst_69 = arith.constant 5.000000e-01 : f32
    %219 = vector.broadcast %cst_69 : f32 to vector<8x64xf32>
    %220 = arith.mulf %219, %218 : vector<8x64xf32>
    %221 = math.tanh %220 : vector<8x64xf32>
    %cst_70 = arith.constant 5.000000e-01 : f32
    %222 = vector.broadcast %cst_70 : f32 to vector<8x64xf32>
    %223 = arith.mulf %222, %221 : vector<8x64xf32>
    %cst_71 = arith.constant 5.000000e-01 : f32
    %224 = vector.broadcast %cst_71 : f32 to vector<8x64xf32>
    %225 = arith.addf %223, %224 : vector<8x64xf32>
    %226 = vector.extract_strided_slice %209 {offsets = [0, 256], sizes = [8, 64], strides = [1, 1]} : vector<8x512xf32> to vector<8x64xf32>
    %227 = math.tanh %226 : vector<8x64xf32>
    %228 = vector.extract_strided_slice %209 {offsets = [0, 384], sizes = [8, 64], strides = [1, 1]} : vector<8x512xf32> to vector<8x64xf32>
    %cst_72 = arith.constant 5.000000e-01 : f32
    %229 = vector.broadcast %cst_72 : f32 to vector<8x64xf32>
    %230 = arith.mulf %229, %228 : vector<8x64xf32>
    %231 = math.tanh %230 : vector<8x64xf32>
    %cst_73 = arith.constant 5.000000e-01 : f32
    %232 = vector.broadcast %cst_73 : f32 to vector<8x64xf32>
    %233 = arith.mulf %232, %231 : vector<8x64xf32>
    %cst_74 = arith.constant 5.000000e-01 : f32
    %234 = vector.broadcast %cst_74 : f32 to vector<8x64xf32>
    %235 = arith.addf %233, %234 : vector<8x64xf32>
    %236 = arith.mulf %225, %202 : vector<8x64xf32>
    %237 = arith.mulf %217, %227 : vector<8x64xf32>
    %238 = arith.addf %236, %237 : vector<8x64xf32>
    %239 = math.tanh %238 : vector<8x64xf32>
    %240 = arith.mulf %235, %239 : vector<8x64xf32>
    %241 = vector.broadcast %c4_i32 : i32 to vector<8x1xi32>
    %242 = arith.cmpi slt, %241, %15 : vector<8x1xi32>
    %243 = vector.shape_cast %242 : vector<8x1xi1> to vector<8x1xi1>
    %244 = vector.broadcast %243 : vector<8x1xi1> to vector<8x64xi1>
    %245 = arith.select %244, %240, %199 : vector<8x64xi1>, vector<8x64xf32>
    %246 = vector.shape_cast %242 : vector<8x1xi1> to vector<8x1xi1>
    %247 = vector.broadcast %246 : vector<8x1xi1> to vector<8x64xi1>
    %248 = arith.select %247, %238, %202 : vector<8x64xi1>, vector<8x64xf32>
    %c5_i32 = arith.constant 5 : i32
    %c8_i32_75 = arith.constant 8 : i32
    %249 = arith.muli %c5_i32, %c8_i32_75 : i32
    %250 = tpu.assume_multiple %249, 8 : i32
    %251 = arith.index_cast %250 : i32 to index
    %c0_76 = arith.constant 0 : index
    %252 = vector.load %arg14[%251, %c0_76] : memref<64x512xf32, #tpu.memory_space<vmem>>, vector<8x512xf32>
    %253 = arith.truncf %245 : vector<8x64xf32> to vector<8x64xbf16>
    %cst_77 = arith.constant dense<0.000000e+00> : vector<8x512xf32>
    %254 = tpu.matmul %253, %16, %cst_77 {dimension_numbers = #tpu.dot_dimension_numbers<[1], [0], [0], [1], [0, 0, 1, 1], [], []>} : vector<8x64xbf16>, vector<64x512xbf16>, vector<8x512xf32> -> vector<8x512xf32>
    %255 = arith.addf %252, %254 : vector<8x512xf32>
    %256 = vector.extract_strided_slice %255 {offsets = [0, 0], sizes = [8, 64], strides = [1, 1]} : vector<8x512xf32> to vector<8x64xf32>
    %cst_78 = arith.constant 5.000000e-01 : f32
    %257 = vector.broadcast %cst_78 : f32 to vector<8x64xf32>
    %258 = arith.mulf %257, %256 : vector<8x64xf32>
    %259 = math.tanh %258 : vector<8x64xf32>
    %cst_79 = arith.constant 5.000000e-01 : f32
    %260 = vector.broadcast %cst_79 : f32 to vector<8x64xf32>
    %261 = arith.mulf %260, %259 : vector<8x64xf32>
    %cst_80 = arith.constant 5.000000e-01 : f32
    %262 = vector.broadcast %cst_80 : f32 to vector<8x64xf32>
    %263 = arith.addf %261, %262 : vector<8x64xf32>
    %264 = vector.extract_strided_slice %255 {offsets = [0, 128], sizes = [8, 64], strides = [1, 1]} : vector<8x512xf32> to vector<8x64xf32>
    %cst_81 = arith.constant 5.000000e-01 : f32
    %265 = vector.broadcast %cst_81 : f32 to vector<8x64xf32>
    %266 = arith.mulf %265, %264 : vector<8x64xf32>
    %267 = math.tanh %266 : vector<8x64xf32>
    %cst_82 = arith.constant 5.000000e-01 : f32
    %268 = vector.broadcast %cst_82 : f32 to vector<8x64xf32>
    %269 = arith.mulf %268, %267 : vector<8x64xf32>
    %cst_83 = arith.constant 5.000000e-01 : f32
    %270 = vector.broadcast %cst_83 : f32 to vector<8x64xf32>
    %271 = arith.addf %269, %270 : vector<8x64xf32>
    %272 = vector.extract_strided_slice %255 {offsets = [0, 256], sizes = [8, 64], strides = [1, 1]} : vector<8x512xf32> to vector<8x64xf32>
    %273 = math.tanh %272 : vector<8x64xf32>
    %274 = vector.extract_strided_slice %255 {offsets = [0, 384], sizes = [8, 64], strides = [1, 1]} : vector<8x512xf32> to vector<8x64xf32>
    %cst_84 = arith.constant 5.000000e-01 : f32
    %275 = vector.broadcast %cst_84 : f32 to vector<8x64xf32>
    %276 = arith.mulf %275, %274 : vector<8x64xf32>
    %277 = math.tanh %276 : vector<8x64xf32>
    %cst_85 = arith.constant 5.000000e-01 : f32
    %278 = vector.broadcast %cst_85 : f32 to vector<8x64xf32>
    %279 = arith.mulf %278, %277 : vector<8x64xf32>
    %cst_86 = arith.constant 5.000000e-01 : f32
    %280 = vector.broadcast %cst_86 : f32 to vector<8x64xf32>
    %281 = arith.addf %279, %280 : vector<8x64xf32>
    %282 = arith.mulf %271, %248 : vector<8x64xf32>
    %283 = arith.mulf %263, %273 : vector<8x64xf32>
    %284 = arith.addf %282, %283 : vector<8x64xf32>
    %285 = math.tanh %284 : vector<8x64xf32>
    %286 = arith.mulf %281, %285 : vector<8x64xf32>
    %287 = vector.broadcast %c5_i32 : i32 to vector<8x1xi32>
    %288 = arith.cmpi slt, %287, %15 : vector<8x1xi32>
    %289 = vector.shape_cast %288 : vector<8x1xi1> to vector<8x1xi1>
    %290 = vector.broadcast %289 : vector<8x1xi1> to vector<8x64xi1>
    %291 = arith.select %290, %286, %245 : vector<8x64xi1>, vector<8x64xf32>
    %292 = vector.shape_cast %288 : vector<8x1xi1> to vector<8x1xi1>
    %293 = vector.broadcast %292 : vector<8x1xi1> to vector<8x64xi1>
    %294 = arith.select %293, %284, %248 : vector<8x64xi1>, vector<8x64xf32>
    %c6_i32 = arith.constant 6 : i32
    %c8_i32_87 = arith.constant 8 : i32
    %295 = arith.muli %c6_i32, %c8_i32_87 : i32
    %296 = tpu.assume_multiple %295, 8 : i32
    %297 = arith.index_cast %296 : i32 to index
    %c0_88 = arith.constant 0 : index
    %298 = vector.load %arg14[%297, %c0_88] : memref<64x512xf32, #tpu.memory_space<vmem>>, vector<8x512xf32>
    %299 = arith.truncf %291 : vector<8x64xf32> to vector<8x64xbf16>
    %cst_89 = arith.constant dense<0.000000e+00> : vector<8x512xf32>
    %300 = tpu.matmul %299, %16, %cst_89 {dimension_numbers = #tpu.dot_dimension_numbers<[1], [0], [0], [1], [0, 0, 1, 1], [], []>} : vector<8x64xbf16>, vector<64x512xbf16>, vector<8x512xf32> -> vector<8x512xf32>
    %301 = arith.addf %298, %300 : vector<8x512xf32>
    %302 = vector.extract_strided_slice %301 {offsets = [0, 0], sizes = [8, 64], strides = [1, 1]} : vector<8x512xf32> to vector<8x64xf32>
    %cst_90 = arith.constant 5.000000e-01 : f32
    %303 = vector.broadcast %cst_90 : f32 to vector<8x64xf32>
    %304 = arith.mulf %303, %302 : vector<8x64xf32>
    %305 = math.tanh %304 : vector<8x64xf32>
    %cst_91 = arith.constant 5.000000e-01 : f32
    %306 = vector.broadcast %cst_91 : f32 to vector<8x64xf32>
    %307 = arith.mulf %306, %305 : vector<8x64xf32>
    %cst_92 = arith.constant 5.000000e-01 : f32
    %308 = vector.broadcast %cst_92 : f32 to vector<8x64xf32>
    %309 = arith.addf %307, %308 : vector<8x64xf32>
    %310 = vector.extract_strided_slice %301 {offsets = [0, 128], sizes = [8, 64], strides = [1, 1]} : vector<8x512xf32> to vector<8x64xf32>
    %cst_93 = arith.constant 5.000000e-01 : f32
    %311 = vector.broadcast %cst_93 : f32 to vector<8x64xf32>
    %312 = arith.mulf %311, %310 : vector<8x64xf32>
    %313 = math.tanh %312 : vector<8x64xf32>
    %cst_94 = arith.constant 5.000000e-01 : f32
    %314 = vector.broadcast %cst_94 : f32 to vector<8x64xf32>
    %315 = arith.mulf %314, %313 : vector<8x64xf32>
    %cst_95 = arith.constant 5.000000e-01 : f32
    %316 = vector.broadcast %cst_95 : f32 to vector<8x64xf32>
    %317 = arith.addf %315, %316 : vector<8x64xf32>
    %318 = vector.extract_strided_slice %301 {offsets = [0, 256], sizes = [8, 64], strides = [1, 1]} : vector<8x512xf32> to vector<8x64xf32>
    %319 = math.tanh %318 : vector<8x64xf32>
    %320 = vector.extract_strided_slice %301 {offsets = [0, 384], sizes = [8, 64], strides = [1, 1]} : vector<8x512xf32> to vector<8x64xf32>
    %cst_96 = arith.constant 5.000000e-01 : f32
    %321 = vector.broadcast %cst_96 : f32 to vector<8x64xf32>
    %322 = arith.mulf %321, %320 : vector<8x64xf32>
    %323 = math.tanh %322 : vector<8x64xf32>
    %cst_97 = arith.constant 5.000000e-01 : f32
    %324 = vector.broadcast %cst_97 : f32 to vector<8x64xf32>
    %325 = arith.mulf %324, %323 : vector<8x64xf32>
    %cst_98 = arith.constant 5.000000e-01 : f32
    %326 = vector.broadcast %cst_98 : f32 to vector<8x64xf32>
    %327 = arith.addf %325, %326 : vector<8x64xf32>
    %328 = arith.mulf %317, %294 : vector<8x64xf32>
    %329 = arith.mulf %309, %319 : vector<8x64xf32>
    %330 = arith.addf %328, %329 : vector<8x64xf32>
    %331 = math.tanh %330 : vector<8x64xf32>
    %332 = arith.mulf %327, %331 : vector<8x64xf32>
    %333 = vector.broadcast %c6_i32 : i32 to vector<8x1xi32>
    %334 = arith.cmpi slt, %333, %15 : vector<8x1xi32>
    %335 = vector.shape_cast %334 : vector<8x1xi1> to vector<8x1xi1>
    %336 = vector.broadcast %335 : vector<8x1xi1> to vector<8x64xi1>
    %337 = arith.select %336, %332, %291 : vector<8x64xi1>, vector<8x64xf32>
    %338 = vector.shape_cast %334 : vector<8x1xi1> to vector<8x1xi1>
    %339 = vector.broadcast %338 : vector<8x1xi1> to vector<8x64xi1>
    %340 = arith.select %339, %330, %294 : vector<8x64xi1>, vector<8x64xf32>
    %c7_i32 = arith.constant 7 : i32
    %c8_i32_99 = arith.constant 8 : i32
    %341 = arith.muli %c7_i32, %c8_i32_99 : i32
    %342 = tpu.assume_multiple %341, 8 : i32
    %343 = arith.index_cast %342 : i32 to index
    %c0_100 = arith.constant 0 : index
    %344 = vector.load %arg14[%343, %c0_100] : memref<64x512xf32, #tpu.memory_space<vmem>>, vector<8x512xf32>
    %345 = arith.truncf %337 : vector<8x64xf32> to vector<8x64xbf16>
    %cst_101 = arith.constant dense<0.000000e+00> : vector<8x512xf32>
    %346 = tpu.matmul %345, %16, %cst_101 {dimension_numbers = #tpu.dot_dimension_numbers<[1], [0], [0], [1], [0, 0, 1, 1], [], []>} : vector<8x64xbf16>, vector<64x512xbf16>, vector<8x512xf32> -> vector<8x512xf32>
    %347 = arith.addf %344, %346 : vector<8x512xf32>
    %348 = vector.extract_strided_slice %347 {offsets = [0, 0], sizes = [8, 64], strides = [1, 1]} : vector<8x512xf32> to vector<8x64xf32>
    %cst_102 = arith.constant 5.000000e-01 : f32
    %349 = vector.broadcast %cst_102 : f32 to vector<8x64xf32>
    %350 = arith.mulf %349, %348 : vector<8x64xf32>
    %351 = math.tanh %350 : vector<8x64xf32>
    %cst_103 = arith.constant 5.000000e-01 : f32
    %352 = vector.broadcast %cst_103 : f32 to vector<8x64xf32>
    %353 = arith.mulf %352, %351 : vector<8x64xf32>
    %cst_104 = arith.constant 5.000000e-01 : f32
    %354 = vector.broadcast %cst_104 : f32 to vector<8x64xf32>
    %355 = arith.addf %353, %354 : vector<8x64xf32>
    %356 = vector.extract_strided_slice %347 {offsets = [0, 128], sizes = [8, 64], strides = [1, 1]} : vector<8x512xf32> to vector<8x64xf32>
    %cst_105 = arith.constant 5.000000e-01 : f32
    %357 = vector.broadcast %cst_105 : f32 to vector<8x64xf32>
    %358 = arith.mulf %357, %356 : vector<8x64xf32>
    %359 = math.tanh %358 : vector<8x64xf32>
    %cst_106 = arith.constant 5.000000e-01 : f32
    %360 = vector.broadcast %cst_106 : f32 to vector<8x64xf32>
    %361 = arith.mulf %360, %359 : vector<8x64xf32>
    %cst_107 = arith.constant 5.000000e-01 : f32
    %362 = vector.broadcast %cst_107 : f32 to vector<8x64xf32>
    %363 = arith.addf %361, %362 : vector<8x64xf32>
    %364 = vector.extract_strided_slice %347 {offsets = [0, 256], sizes = [8, 64], strides = [1, 1]} : vector<8x512xf32> to vector<8x64xf32>
    %365 = math.tanh %364 : vector<8x64xf32>
    %366 = vector.extract_strided_slice %347 {offsets = [0, 384], sizes = [8, 64], strides = [1, 1]} : vector<8x512xf32> to vector<8x64xf32>
    %cst_108 = arith.constant 5.000000e-01 : f32
    %367 = vector.broadcast %cst_108 : f32 to vector<8x64xf32>
    %368 = arith.mulf %367, %366 : vector<8x64xf32>
    %369 = math.tanh %368 : vector<8x64xf32>
    %cst_109 = arith.constant 5.000000e-01 : f32
    %370 = vector.broadcast %cst_109 : f32 to vector<8x64xf32>
    %371 = arith.mulf %370, %369 : vector<8x64xf32>
    %cst_110 = arith.constant 5.000000e-01 : f32
    %372 = vector.broadcast %cst_110 : f32 to vector<8x64xf32>
    %373 = arith.addf %371, %372 : vector<8x64xf32>
    %374 = arith.mulf %363, %340 : vector<8x64xf32>
    %375 = arith.mulf %355, %365 : vector<8x64xf32>
    %376 = arith.addf %374, %375 : vector<8x64xf32>
    %377 = math.tanh %376 : vector<8x64xf32>
    %378 = arith.mulf %373, %377 : vector<8x64xf32>
    %379 = vector.broadcast %c7_i32 : i32 to vector<8x1xi32>
    %380 = arith.cmpi slt, %379, %15 : vector<8x1xi32>
    %381 = vector.shape_cast %380 : vector<8x1xi1> to vector<8x1xi1>
    %382 = vector.broadcast %381 : vector<8x1xi1> to vector<8x64xi1>
    %383 = arith.select %382, %378, %337 : vector<8x64xi1>, vector<8x64xf32>
    %384 = vector.shape_cast %380 : vector<8x1xi1> to vector<8x1xi1>
    %385 = vector.broadcast %384 : vector<8x1xi1> to vector<8x64xi1>
    %386 = arith.select %385, %376, %340 : vector<8x64xi1>, vector<8x64xf32>
    %c8_i32_111 = arith.constant 8 : i32
    %387 = tpu.iota {dimensions = array<i32: 1>} : vector<8x128xi32>
    %c0_112 = arith.constant 0 : index
    %c0_113 = arith.constant 0 : index
    %388 = vector.load %arg2[%c0_112, %c0_113] : memref<8x1xi32, #tpu.memory_space<vmem>>, vector<8x1xi32>
    %389 = vector.broadcast %388 : vector<8x1xi32> to vector<8x128xi32>
    %390 = arith.cmpi eq, %389, %387 : vector<8x128xi32>
    %cst_114 = arith.constant 1.000000e+00 : f32
    %cst_115 = arith.constant 0.000000e+00 : f32
    %391 = vector.broadcast %cst_114 : f32 to vector<8x128xf32>
    %392 = vector.broadcast %cst_115 : f32 to vector<8x128xf32>
    %393 = arith.select %390, %391, %392 : vector<8x128xi1>, vector<8x128xf32>
    %394 = arith.truncf %393 : vector<8x128xf32> to vector<8x128xbf16>
    %c0_116 = arith.constant 0 : index
    %c0_117 = arith.constant 0 : index
    %395 = vector.load %arg8[%c0_116, %c0_117] : memref<128x512xbf16, #tpu.memory_space<vmem>>, vector<128x512xbf16>
    %cst_118 = arith.constant dense<0.000000e+00> : vector<8x512xf32>
    %396 = tpu.matmul %394, %395, %cst_118 {dimension_numbers = #tpu.dot_dimension_numbers<[1], [0], [0], [1], [0, 0, 1, 1], [], []>} : vector<8x128xbf16>, vector<128x512xbf16>, vector<8x512xf32> -> vector<8x512xf32>
    %c0_119 = arith.constant 0 : index
    %c0_120 = arith.constant 0 : index
    %397 = vector.load %arg9[%c0_119, %c0_120] : memref<1x512xf32, #tpu.memory_space<vmem>>, vector<1x512xf32>
    %398 = vector.broadcast %397 : vector<1x512xf32> to vector<8x512xf32>
    %399 = arith.addf %396, %398 : vector<8x512xf32>
    %400 = vector.extract_strided_slice %399 {offsets = [0, 0], sizes = [8, 64], strides = [1, 1]} : vector<8x512xf32> to vector<8x64xf32>
    %cst_121 = arith.constant 5.000000e-01 : f32
    %401 = vector.broadcast %cst_121 : f32 to vector<8x64xf32>
    %402 = arith.mulf %401, %400 : vector<8x64xf32>
    %403 = math.tanh %402 : vector<8x64xf32>
    %cst_122 = arith.constant 5.000000e-01 : f32
    %404 = vector.broadcast %cst_122 : f32 to vector<8x64xf32>
    %405 = arith.mulf %404, %403 : vector<8x64xf32>
    %cst_123 = arith.constant 5.000000e-01 : f32
    %406 = vector.broadcast %cst_123 : f32 to vector<8x64xf32>
    %407 = arith.addf %405, %406 : vector<8x64xf32>
    %408 = vector.extract_strided_slice %399 {offsets = [0, 256], sizes = [8, 64], strides = [1, 1]} : vector<8x512xf32> to vector<8x64xf32>
    %409 = math.tanh %408 : vector<8x64xf32>
    %410 = vector.extract_strided_slice %399 {offsets = [0, 384], sizes = [8, 64], strides = [1, 1]} : vector<8x512xf32> to vector<8x64xf32>
    %cst_124 = arith.constant 5.000000e-01 : f32
    %411 = vector.broadcast %cst_124 : f32 to vector<8x64xf32>
    %412 = arith.mulf %411, %410 : vector<8x64xf32>
    %413 = math.tanh %412 : vector<8x64xf32>
    %cst_125 = arith.constant 5.000000e-01 : f32
    %414 = vector.broadcast %cst_125 : f32 to vector<8x64xf32>
    %415 = arith.mulf %414, %413 : vector<8x64xf32>
    %cst_126 = arith.constant 5.000000e-01 : f32
    %416 = vector.broadcast %cst_126 : f32 to vector<8x64xf32>
    %417 = arith.addf %415, %416 : vector<8x64xf32>
    %418 = arith.mulf %407, %409 : vector<8x64xf32>
    %419 = math.tanh %418 : vector<8x64xf32>
    %420 = arith.mulf %417, %419 : vector<8x64xf32>
    %c0_127 = arith.constant 0 : index
    %c0_128 = arith.constant 0 : index
    %421 = vector.load %arg4[%c0_127, %c0_128] : memref<8x1xf32, #tpu.memory_space<vmem>>, vector<8x1xf32>
    %422 = vector.broadcast %421 : vector<8x1xf32> to vector<8x64xf32>
    %423 = arith.mulf %383, %422 : vector<8x64xf32>
    %c0_129 = arith.constant 0 : index
    %c0_130 = arith.constant 0 : index
    %424 = vector.load %arg10[%c0_129, %c0_130] : memref<64x128xf32, #tpu.memory_space<vmem>>, vector<64x128xf32>
    %cst_131 = arith.constant dense<0.000000e+00> : vector<8x128xf32>
    %425 = tpu.matmul %423, %424, %cst_131 {dimension_numbers = #tpu.dot_dimension_numbers<[1], [0], [0], [1], [0, 0, 1, 1], [], []>} : vector<8x64xf32>, vector<64x128xf32>, vector<8x128xf32> -> vector<8x128xf32>
    %426 = vector.broadcast %421 : vector<8x1xf32> to vector<8x64xf32>
    %427 = arith.mulf %420, %426 : vector<8x64xf32>
    %c0_132 = arith.constant 0 : index
    %c0_133 = arith.constant 0 : index
    %428 = vector.load %arg11[%c0_132, %c0_133] : memref<64x128xf32, #tpu.memory_space<vmem>>, vector<64x128xf32>
    %cst_134 = arith.constant dense<0.000000e+00> : vector<8x128xf32>
    %429 = tpu.matmul %427, %428, %cst_134 {dimension_numbers = #tpu.dot_dimension_numbers<[1], [0], [0], [1], [0, 0, 1, 1], [], []>} : vector<8x64xf32>, vector<64x128xf32>, vector<8x128xf32> -> vector<8x128xf32>
    %430 = arith.addf %425, %429 : vector<8x128xf32>
    %c0_135 = arith.constant 0 : index
    %c0_136 = arith.constant 0 : index
    %431 = vector.load %arg12[%c0_135, %c0_136] : memref<1x128xf32, #tpu.memory_space<vmem>>, vector<1x128xf32>
    %432 = vector.broadcast %431 : vector<1x128xf32> to vector<8x128xf32>
    %433 = arith.addf %430, %432 : vector<8x128xf32>
    %c0_137 = arith.constant 0 : index
    %c0_138 = arith.constant 0 : index
    %434 = vector.load %arg13[%c0_137, %c0_138] : memref<8x128xf32, #tpu.memory_space<vmem>>, vector<8x128xf32>
    tpu.vector_store %arg13[%c0_137, %c0_138], %433 {strides = array<i32>} : memref<8x128xf32, #tpu.memory_space<vmem>>, vector<8x128xf32>,
    return
  }
  func.func @transform_0(%arg0: i32) -> (i32, i32, i32) {
    %c0_i32 = arith.constant 0 : i32
    %c0_i32_0 = arith.constant 0 : i32
    %c0_i32_1 = arith.constant 0 : i32
    return %arg0, %c0_i32, %c0_i32_0 : i32, i32, i32
  }
  func.func @transform_1(%arg0: i32) -> (i32, i32) {
    %c0_i32 = arith.constant 0 : i32
    %c0_i32_0 = arith.constant 0 : i32
    return %arg0, %c0_i32 : i32, i32
  }
  func.func @transform_2(%arg0: i32) -> (i32, i32) {
    %c0_i32 = arith.constant 0 : i32
    %c0_i32_0 = arith.constant 0 : i32
    return %arg0, %c0_i32 : i32, i32
  }
  func.func @transform_3(%arg0: i32) -> (i32, i32) {
    %c0_i32 = arith.constant 0 : i32
    %c0_i32_0 = arith.constant 0 : i32
    return %arg0, %c0_i32 : i32, i32
  }
  func.func @transform_4(%arg0: i32) -> (i32, i32) {
    %c0_i32 = arith.constant 0 : i32
    %c0_i32_0 = arith.constant 0 : i32
    %c0_i32_1 = arith.constant 0 : i32
    return %c0_i32, %c0_i32_0 : i32, i32
  }
  func.func @transform_5(%arg0: i32) -> (i32, i32) {
    %c0_i32 = arith.constant 0 : i32
    %c0_i32_0 = arith.constant 0 : i32
    %c0_i32_1 = arith.constant 0 : i32
    return %c0_i32, %c0_i32_0 : i32, i32
  }
  func.func @transform_6(%arg0: i32) -> (i32, i32) {
    %c0_i32 = arith.constant 0 : i32
    %c0_i32_0 = arith.constant 0 : i32
    %c0_i32_1 = arith.constant 0 : i32
    return %c0_i32, %c0_i32_0 : i32, i32
  }
  func.func @transform_7(%arg0: i32) -> (i32, i32) {
    %c0_i32 = arith.constant 0 : i32
    %c0_i32_0 = arith.constant 0 : i32
    %c0_i32_1 = arith.constant 0 : i32
    return %c0_i32, %c0_i32_0 : i32, i32
  }
  func.func @transform_8(%arg0: i32) -> (i32, i32) {
    %c0_i32 = arith.constant 0 : i32
    %c0_i32_0 = arith.constant 0 : i32
    %c0_i32_1 = arith.constant 0 : i32
    return %c0_i32, %c0_i32_0 : i32, i32
  }
  func.func @transform_9(%arg0: i32) -> (i32, i32) {
    %c0_i32 = arith.constant 0 : i32
    %c0_i32_0 = arith.constant 0 : i32
    %c0_i32_1 = arith.constant 0 : i32
    return %c0_i32, %c0_i32_0 : i32, i32
  }
  func.func @transform_10(%arg0: i32) -> (i32, i32) {
    %c0_i32 = arith.constant 0 : i32
    %c0_i32_0 = arith.constant 0 : i32
    %c0_i32_1 = arith.constant 0 : i32
    return %c0_i32, %c0_i32_0 : i32, i32
  }
  func.func @transform_11(%arg0: i32) -> (i32, i32) {
    %c0_i32 = arith.constant 0 : i32
    %c0_i32_0 = arith.constant 0 : i32
    %c0_i32_1 = arith.constant 0 : i32
    return %c0_i32, %c0_i32_0 : i32, i32
  }
  func.func @transform_12(%arg0: i32) -> (i32, i32) {
    %c0_i32 = arith.constant 0 : i32
    %c0_i32_0 = arith.constant 0 : i32
    return %arg0, %c0_i32 : i32, i32
  }
}

</mosaic_0001>

<llo_original>
// kernel: smiles_net_forward.1
$region0: #{smiles_net_forward.1}
  #allocation0 [shape = 'u32[]', space=smem, size = 0x4, offset = 0x4, fixed_abs, tag = 'smem constant byte address 0x4 - core index']
  #allocation1 [shape = 'u32[144,128]{1,0:T(1,128)}', space=vmem, size = 0x12000, scoped, tag = 'internal scratch']
  #allocation2 [shape = 'f32[64,512]{1,0:T(8,128)}', space=vmem, size = 0x20000, scoped, tag = 'scratch operand']
  %s0 = inlined_call_operand.vmem [shape: s32[1,64,1], index: 0, kind: input, shape index: {}]
  %s1 = inlined_call_operand.vmem [shape: s32[8,1], index: 1, kind: input, shape index: {}]
  %s2 = inlined_call_operand.vmem [shape: s32[8,1], index: 2, kind: input, shape index: {}]
  %s3 = inlined_call_operand.vmem [shape: f32[8,1], index: 3, kind: input, shape index: {}]
  %s4 = inlined_call_operand.vmem [shape: bf16[128,512], index: 4, kind: input, shape index: {}]
  %s5 = inlined_call_operand.vmem [shape: bf16[64,512], index: 5, kind: input, shape index: {}]
  %s6 = inlined_call_operand.vmem [shape: f32[1,512], index: 6, kind: input, shape index: {}]
  %s7 = inlined_call_operand.vmem [shape: bf16[128,512], index: 7, kind: input, shape index: {}]
  %s8 = inlined_call_operand.vmem [shape: f32[1,512], index: 8, kind: input, shape index: {}]
  %s9 = inlined_call_operand.vmem [shape: f32[64,128], index: 9, kind: input, shape index: {}]
  %s10 = inlined_call_operand.vmem [shape: f32[64,128], index: 10, kind: input, shape index: {}]
  %s11 = inlined_call_operand.vmem [shape: f32[1,128], index: 11, kind: input, shape index: {}]
  %s12 = inlined_call_operand.vmem [shape: f32[8,128], index: 12, kind: output, shape index: {}]
  %s13 = sld [smem:[#allocation0]]
  $region58: #{smiles_net_forward.1} parent=0
    _
  %s15 = ssub.s32 1, %s13
  %s16 = scalar_select 0, %s15, %s13
  // Predicated region
  $region2: #{smiles_net_forward.1} parent=0 // pred_check
    _
  $region3: #{smiles_net_forward.1} parent=0 // pred_check_branch
    %18 = sbr.rel (0) target = $region5
  $region4: #{smiles_net_forward.1} parent=0 // pred_region
    _
  $region5: #{smiles_net_forward.1} parent=0 // pred_fallthru
    _
  // Predicated region
  $region6: #{smiles_net_forward.1} parent=0 // pred_check
    _
  $region7: #{smiles_net_forward.1} parent=0 // pred_check_branch
    %20 = sbr.rel (0) target = $region9
  $region8: #{smiles_net_forward.1} parent=0 // pred_region
    _
  $region9: #{smiles_net_forward.1} parent=0 // pred_fallthru
    _
  // Predicated region
  $region10: #{smiles_net_forward.1} parent=0 // pred_check
    _
  $region11: #{smiles_net_forward.1} parent=0 // pred_check_branch
    %22 = sbr.rel (0) target = $region13
  $region12: #{smiles_net_forward.1} parent=0 // pred_region
    _
  $region13: #{smiles_net_forward.1} parent=0 // pred_fallthru
    _
  // Predicated region
  $region14: #{smiles_net_forward.1} parent=0 // pred_check
    _
  $region15: #{smiles_net_forward.1} parent=0 // pred_check_branch
    %24 = sbr.rel (0) target = $region17
  $region16: #{smiles_net_forward.1} parent=0 // pred_region
    _
  $region17: #{smiles_net_forward.1} parent=0 // pred_fallthru
    _
  // Predicated region
  $region18: #{smiles_net_forward.1} parent=0 // pred_check
    _
  $region19: #{smiles_net_forward.1} parent=0 // pred_check_branch
    %26 = sbr.rel (0) target = $region21
  $region20: #{smiles_net_forward.1} parent=0 // pred_region
    _
  $region21: #{smiles_net_forward.1} parent=0 // pred_fallthru
    _
  // Predicated region
  $region22: #{smiles_net_forward.1} parent=0 // pred_check
    _
  $region23: #{smiles_net_forward.1} parent=0 // pred_check_branch
    %28 = sbr.rel (0) target = $region25
  $region24: #{smiles_net_forward.1} parent=0 // pred_region
    _
  $region25: #{smiles_net_forward.1} parent=0 // pred_fallthru
    _
  // Predicated region
  $region26: #{smiles_net_forward.1} parent=0 // pred_check
    _
  $region27: #{smiles_net_forward.1} parent=0 // pred_check_branch
    %30 = sbr.rel (0) target = $region29
  $region28: #{smiles_net_forward.1} parent=0 // pred_region
    _
  $region29: #{smiles_net_forward.1} parent=0 // pred_fallthru
    _
  // Predicated region
  $region30: #{smiles_net_forward.1} parent=0 // pred_check
    _
  $region31: #{smiles_net_forward.1} parent=0 // pred_check_branch
    %32 = sbr.rel (0) target = $region33
  $region32: #{smiles_net_forward.1} parent=0 // pred_region
    _
  $region33: #{smiles_net_forward.1} parent=0 // pred_fallthru
    _
  // Predicated region
  $region34: #{smiles_net_forward.1} parent=0 // pred_check
    _
  $region35: #{smiles_net_forward.1} parent=0 // pred_check_branch
    %34 = sbr.rel (0) target = $region37
  $region36: #{smiles_net_forward.1} parent=0 // pred_region
    _
  $region37: #{smiles_net_forward.1} parent=0 // pred_fallthru
    _
  // Predicated region
  $region38: #{smiles_net_forward.1} parent=0 // pred_check
    _
  $region39: #{smiles_net_forward.1} parent=0 // pred_check_branch
    %36 = sbr.rel (0) target = $region41
  $region40: #{smiles_net_forward.1} parent=0 // pred_region
    _
  $region41: #{smiles_net_forward.1} parent=0 // pred_fallthru
    _
  // Predicated region
  $region42: #{smiles_net_forward.1} parent=0 // pred_check
    _
  $region43: #{smiles_net_forward.1} parent=0 // pred_check_branch
    %38 = sbr.rel (0) target = $region45
  $region44: #{smiles_net_forward.1} parent=0 // pred_region
    _
  $region45: #{smiles_net_forward.1} parent=0 // pred_fallthru
    _
  // Predicated region
  $region46: #{smiles_net_forward.1} parent=0 // pred_check
    _
  $region47: #{smiles_net_forward.1} parent=0 // pred_check_branch
    %40 = sbr.rel (0) target = $region49
  $region48: #{smiles_net_forward.1} parent=0 // pred_region
    _
  $region49: #{smiles_net_forward.1} parent=0 // pred_fallthru
    _
  %v42 = vld [vmem:[%s0] sm:$0xff]
  %v43 = vld [vmem:[%s0 + $0x8] sm:$0xff]
  %v44 = vld [vmem:[%s0 + $0x10] sm:$0xff]
  %v45 = vld [vmem:[%s0 + $0x18] sm:$0xff]
  %v46 = vld [vmem:[%s0 + $0x20] sm:$0xff]
  %v47 = vld [vmem:[%s0 + $0x28] sm:$0xff]
  %v48 = vld [vmem:[%s0 + $0x30] sm:$0xff]
  %v49 = vld [vmem:[%s0 + $0x38] sm:$0xff]
  %v50 = vlaneseq
  %v51 = vand.u32 %v50, 127
  %52 = vset.pattern.permute.xlu0 0
  %53 = vperm.xlu0 %52, %v42
  %v54 = vpop.permute.xlu0 %53
  %55 = vset.pattern.permute.xlu0 0
  %56 = vperm.xlu0 %55, %v43
  %v57 = vpop.permute.xlu0 %56
  %58 = vset.pattern.permute.xlu0 0
  %59 = vperm.xlu0 %58, %v44
  %v60 = vpop.permute.xlu0 %59
  %61 = vset.pattern.permute.xlu0 0
  %62 = vperm.xlu0 %61, %v45
  %v63 = vpop.permute.xlu0 %62
  %64 = vset.pattern.permute.xlu0 0
  %65 = vperm.xlu0 %64, %v46
  %v66 = vpop.permute.xlu0 %65
  %67 = vset.pattern.permute.xlu0 0
  %68 = vperm.xlu0 %67, %v47
  %v69 = vpop.permute.xlu0 %68
  %70 = vset.pattern.permute.xlu0 0
  %71 = vperm.xlu0 %70, %v48
  %v72 = vpop.permute.xlu0 %71
  %73 = vset.pattern.permute.xlu0 0
  %74 = vperm.xlu0 %73, %v49
  %v75 = vpop.permute.xlu0 %74
  %vm76 = vcmp.eq.s32.totalorder %v54, %v51
  %vm77 = vcmp.eq.s32.totalorder %v57, %v51
  %vm78 = vcmp.eq.s32.totalorder %v60, %v51
  %vm79 = vcmp.eq.s32.totalorder %v63, %v51
  %vm80 = vcmp.eq.s32.totalorder %v66, %v51
  %vm81 = vcmp.eq.s32.totalorder %v69, %v51
  %vm82 = vcmp.eq.s32.totalorder %v72, %v51
  %vm83 = vcmp.eq.s32.totalorder %v75, %v51
  %v84 = vsel %vm76, 1.0, 0.0
  %v85 = vsel %vm77, 1.0, 0.0
  %v86 = vsel %vm78, 1.0, 0.0
  %v87 = vsel %vm79, 1.0, 0.0
  %v88 = vsel %vm80, 1.0, 0.0
  %v89 = vsel %vm81, 1.0, 0.0
  %v90 = vsel %vm82, 1.0, 0.0
  %v91 = vsel %vm83, 1.0, 0.0
  %v92 = vpack.c.bf16 %v85, %v84
  %v93 = vpack.c.bf16 %v87, %v86
  %v94 = vpack.c.bf16 %v89, %v88
  %v95 = vpack.c.bf16 %v91, %v90
  %v96 = vld [vmem:[%s4] sm:$0xff]
  %v97 = vld [vmem:[%s4 + $0x8] sm:$0xff]
  %v98 = vld [vmem:[%s4 + $0x10] sm:$0xff]
  %v99 = vld [vmem:[%s4 + $0x18] sm:$0xff]
  %v100 = vld [vmem:[%s4 + $0x20] sm:$0xff]
  %v101 = vld [vmem:[%s4 + $0x28] sm:$0xff]
  %v102 = vld [vmem:[%s4 + $0x30] sm:$0xff]
  %v103 = vld [vmem:[%s4 + $0x38] sm:$0xff]
  %v104 = vld [vmem:[%s4 + $0x40] sm:$0xff]
  %v105 = vld [vmem:[%s4 + $0x48] sm:$0xff]
  %v106 = vld [vmem:[%s4 + $0x50] sm:$0xff]
  %v107 = vld [vmem:[%s4 + $0x58] sm:$0xff]
  %v108 = vld [vmem:[%s4 + $0x60] sm:$0xff]
  %v109 = vld [vmem:[%s4 + $0x68] sm:$0xff]
  %v110 = vld [vmem:[%s4 + $0x70] sm:$0xff]
  %v111 = vld [vmem:[%s4 + $0x78] sm:$0xff]
  %v112 = vld [vmem:[%s4 + $0x80] sm:$0xff]
  %v113 = vld [vmem:[%s4 + $0x88] sm:$0xff]
  %v114 = vld [vmem:[%s4 + $0x90] sm:$0xff]
  %v115 = vld [vmem:[%s4 + $0x98] sm:$0xff]
  %v116 = vld [vmem:[%s4 + $0xa0] sm:$0xff]
  %v117 = vld [vmem:[%s4 + $0xa8] sm:$0xff]
  %v118 = vld [vmem:[%s4 + $0xb0] sm:$0xff]
  %v119 = vld [vmem:[%s4 + $0xb8] sm:$0xff]
  %v120 = vld [vmem:[%s4 + $0xc0] sm:$0xff]
  %v121 = vld [vmem:[%s4 + $0xc8] sm:$0xff]
  %v122 = vld [vmem:[%s4 + $0xd0] sm:$0xff]
  %v123 = vld [vmem:[%s4 + $0xd8] sm:$0xff]
  %v124 = vld [vmem:[%s4 + $0xe0] sm:$0xff]
  %v125 = vld [vmem:[%s4 + $0xe8] sm:$0xff]
  %v126 = vld [vmem:[%s4 + $0xf0] sm:$0xff]
  %v127 = vld [vmem:[%s4 + $0xf8] sm:$0xff]
  %v128 = vld [vmem:[%s6] sm:$0xf]
  %v130 = vlaneseq
  %v131 = vshrl.u32 %v130, 7
  %v132 = vsub.s32 0, %v131
  %v133 = vrot.slane %v128, %v132
  %v134 = vlaneseq
  %v135 = vshrl.u32 %v134, 7
  %v136 = vsub.s32 1, %v135
  %v137 = vrot.slane %v128, %v136
  %v138 = vlaneseq
  %v139 = vshrl.u32 %v138, 7
  %v140 = vsub.s32 2, %v139
  %v141 = vrot.slane %v128, %v140
  %v142 = vlaneseq
  %v143 = vshrl.u32 %v142, 7
  %v144 = vsub.s32 3, %v143
  %v145 = vrot.slane %v128, %v144
  %v182 = vunpack.c.l.b16 %v96
  %v183 = vunpack.c.h.b16 %v96
  %v184 = vunpack.c.l.b16 %v97
  %v185 = vunpack.c.h.b16 %v97
  %v186 = vunpack.c.l.b16 %v98
  %v187 = vunpack.c.h.b16 %v98
  %v188 = vunpack.c.l.b16 %v99
  %v189 = vunpack.c.h.b16 %v99
  %v190 = vunpack.c.l.b16 %v100
  %v191 = vunpack.c.h.b16 %v100
  %v192 = vunpack.c.l.b16 %v101
  %v193 = vunpack.c.h.b16 %v101
  %v194 = vunpack.c.l.b16 %v102
  %v195 = vunpack.c.h.b16 %v102
  %v196 = vunpack.c.l.b16 %v103
  %v197 = vunpack.c.h.b16 %v103
  %v198 = vunpack.c.l.b16 %v104
  %v199 = vunpack.c.h.b16 %v104
  %v200 = vunpack.c.l.b16 %v105
  %v201 = vunpack.c.h.b16 %v105
  %v202 = vunpack.c.l.b16 %v106
  %v203 = vunpack.c.h.b16 %v106
  %v204 = vunpack.c.l.b16 %v107
  %v205 = vunpack.c.h.b16 %v107
  %v206 = vunpack.c.l.b16 %v108
  %v207 = vunpack.c.h.b16 %v108
  %v208 = vunpack.c.l.b16 %v109
  %v209 = vunpack.c.h.b16 %v109
  %v210 = vunpack.c.l.b16 %v110
  %v211 = vunpack.c.h.b16 %v110
  %v212 = vunpack.c.l.b16 %v111
  %v213 = vunpack.c.h.b16 %v111
  %v214 = vunpack.c.l.b16 %v112
  %v215 = vunpack.c.h.b16 %v112
  %v216 = vunpack.c.l.b16 %v113
  %v217 = vunpack.c.h.b16 %v113
  %v218 = vunpack.c.l.b16 %v114
  %v219 = vunpack.c.h.b16 %v114
  %v220 = vunpack.c.l.b16 %v115
  %v221 = vunpack.c.h.b16 %v115
  %v222 = vunpack.c.l.b16 %v116
  %v223 = vunpack.c.h.b16 %v116
  %v224 = vunpack.c.l.b16 %v117
  %v225 = vunpack.c.h.b16 %v117
  %v226 = vunpack.c.l.b16 %v118
  %v227 = vunpack.c.h.b16 %v118
  %v228 = vunpack.c.l.b16 %v119
  %v229 = vunpack.c.h.b16 %v119
  %v230 = vunpack.c.l.b16 %v120
  %v231 = vunpack.c.h.b16 %v120
  %v232 = vunpack.c.l.b16 %v121
  %v233 = vunpack.c.h.b16 %v121
  %v234 = vunpack.c.l.b16 %v122
  %v235 = vunpack.c.h.b16 %v122
  %v236 = vunpack.c.l.b16 %v123
  %v237 = vunpack.c.h.b16 %v123
  %v238 = vunpack.c.l.b16 %v124
  %v239 = vunpack.c.h.b16 %v124
  %v240 = vunpack.c.l.b16 %v125
  %v241 = vunpack.c.h.b16 %v125
  %v242 = vunpack.c.l.b16 %v126
  %v243 = vunpack.c.h.b16 %v126
  %v244 = vunpack.c.l.b16 %v127
  %v245 = vunpack.c.h.b16 %v127
  %v246 = vpack.c.b16 %v186, %v182
  %v247 = vpack.c.b16 %v187, %v183
  %v248 = vpack.c.b16 %v188, %v184
  %v249 = vpack.c.b16 %v189, %v185
  %v250 = vpack.c.b16 %v194, %v190
  %v251 = vpack.c.b16 %v195, %v191
  %v252 = vpack.c.b16 %v196, %v192
  %v253 = vpack.c.b16 %v197, %v193
  %v254 = vpack.c.b16 %v202, %v198
  %v255 = vpack.c.b16 %v203, %v199
  %v256 = vpack.c.b16 %v204, %v200
  %v257 = vpack.c.b16 %v205, %v201
  %v258 = vpack.c.b16 %v210, %v206
  %v259 = vpack.c.b16 %v211, %v207
  %v260 = vpack.c.b16 %v212, %v208
  %v261 = vpack.c.b16 %v213, %v209
  %v262 = vpack.c.b16 %v218, %v214
  %v263 = vpack.c.b16 %v219, %v215
  %v264 = vpack.c.b16 %v220, %v216
  %v265 = vpack.c.b16 %v221, %v217
  %v266 = vpack.c.b16 %v226, %v222
  %v267 = vpack.c.b16 %v227, %v223
  %v268 = vpack.c.b16 %v228, %v224
  %v269 = vpack.c.b16 %v229, %v225
  %v270 = vpack.c.b16 %v234, %v230
  %v271 = vpack.c.b16 %v235, %v231
  %v272 = vpack.c.b16 %v236, %v232
  %v273 = vpack.c.b16 %v237, %v233
  %v274 = vpack.c.b16 %v242, %v238
  %v275 = vpack.c.b16 %v243, %v239
  %v276 = vpack.c.b16 %v244, %v240
  %v277 = vpack.c.b16 %v245, %v241
  %310 = vmatprep.subr.bf16.mxu0 %v247
  %311 = vmatpush1.bf16.msra.mxu0 %v246
  %312 = vmatprep.subr.bf16.mxu0 %v251
  %313 = vmatpush1.bf16.msra.mxu0 %v250
  %314 = vmatprep.subr.bf16.mxu0 %v255
  %315 = vmatpush1.bf16.msra.mxu0 %v254
  %316 = vmatprep.subr.bf16.mxu0 %v259
  %317 = vmatpush1.bf16.msra.mxu0 %v258
  %318 = vmatprep.subr.bf16.mxu0 %v263
  %319 = vmatpush1.bf16.msra.mxu0 %v262
  %320 = vmatprep.subr.bf16.mxu0 %v267
  %321 = vmatpush1.bf16.msra.mxu0 %v266
  %322 = vmatprep.subr.bf16.mxu0 %v271
  %323 = vmatpush1.bf16.msra.mxu0 %v270
  %324 = vmatprep.subr.bf16.mxu0 %v275
  %325 = vmatpush1.bf16.msra.mxu0 %v274
  %326 = vmatprep.subr.bf16.mxu0 0
  %327 = vmatpush1.bf16.msra.mxu0 0
  %328 = vmatprep.subr.bf16.mxu0 0
  %329 = vmatpush1.bf16.msra.mxu0 0
  %330 = vmatprep.subr.bf16.mxu0 0
  %331 = vmatpush1.bf16.msra.mxu0 0
  %332 = vmatprep.subr.bf16.mxu0 0
  %333 = vmatpush1.bf16.msra.mxu0 0
  %334 = vmatprep.subr.bf16.mxu0 0
  %335 = vmatpush1.bf16.msra.mxu0 0
  %336 = vmatprep.subr.bf16.mxu0 0
  %337 = vmatpush1.bf16.msra.mxu0 0
  %338 = vmatprep.subr.bf16.mxu0 0
  %339 = vmatpush1.bf16.msra.mxu0 0
  %340 = vmatprep.subr.bf16.mxu0 0
  %341 = vmatpush1.bf16.msra.mxu0 0
  %342 = vmatprep.mubr.bf16.mxu0 0
  %343 = vmatmul.mubr.bf16.gmra.mrb[0].mxu0 %v92
  %v344 = vpop.f32.mrb[0].mxu0
  %v345 = vadd.f32 %v133, %v344
  %v346 = vpop.f32.mrb[0].mxu0
  %v347 = vadd.f32 %v137, %v346
  %v348 = vpop.f32.mrb[0].mxu0
  %v349 = vadd.f32 %v133, %v348
  %v350 = vpop.f32.mrb[0].mxu0
  %v351 = vadd.f32 %v137, %v350
  %352 = vmatprep.mubr.bf16.mxu0 0
  %353 = vmatmul.mubr.bf16.gmra.mrb[0].mxu0 %v93
  %v354 = vpop.f32.mrb[0].mxu0
  %v355 = vadd.f32 %v133, %v354
  %v356 = vpop.f32.mrb[0].mxu0
  %v357 = vadd.f32 %v137, %v356
  %v358 = vpop.f32.mrb[0].mxu0
  %v359 = vadd.f32 %v133, %v358
  %v360 = vpop.f32.mrb[0].mxu0
  %v361 = vadd.f32 %v137, %v360
  %362 = vmatprep.mubr.bf16.mxu0 0
  %363 = vmatmul.mubr.bf16.gmra.mrb[0].mxu0 %v94
  %v364 = vpop.f32.mrb[0].mxu0
  %v365 = vadd.f32 %v133, %v364
  %v366 = vpop.f32.mrb[0].mxu0
  %v367 = vadd.f32 %v137, %v366
  %v368 = vpop.f32.mrb[0].mxu0
  %v369 = vadd.f32 %v133, %v368
  %v370 = vpop.f32.mrb[0].mxu0
  %v371 = vadd.f32 %v137, %v370
  %372 = vmatprep.mubr.bf16.mxu0 0
  %373 = vmatmul.mubr.bf16.gmra.mrb[0].mxu0 %v95
  %v374 = vpop.f32.mrb[0].mxu0
  %v375 = vadd.f32 %v133, %v374
  %v376 = vpop.f32.mrb[0].mxu0
  %v377 = vadd.f32 %v137, %v376
  %v378 = vpop.f32.mrb[0].mxu0
  %v379 = vadd.f32 %v133, %v378
  %v380 = vpop.f32.mrb[0].mxu0
  %v381 = vadd.f32 %v137, %v380
  %382 = vdwg.mxu0
  %383 = vmatprep.subr.bf16.mxu0 %v249
  %384 = vmatpush1.bf16.msra.mxu0 %v248
  %385 = vmatprep.subr.bf16.mxu0 %v253
  %386 = vmatpush1.bf16.msra.mxu0 %v252
  %387 = vmatprep.subr.bf16.mxu0 %v257
  %388 = vmatpush1.bf16.msra.mxu0 %v256
  %389 = vmatprep.subr.bf16.mxu0 %v261
  %390 = vmatpush1.bf16.msra.mxu0 %v260
  %391 = vmatprep.subr.bf16.mxu0 %v265
  %392 = vmatpush1.bf16.msra.mxu0 %v264
  %393 = vmatprep.subr.bf16.mxu0 %v269
  %394 = vmatpush1.bf16.msra.mxu0 %v268
  %395 = vmatprep.subr.bf16.mxu0 %v273
  %396 = vmatpush1.bf16.msra.mxu0 %v272
  %397 = vmatprep.subr.bf16.mxu0 %v277
  %398 = vmatpush1.bf16.msra.mxu0 %v276
  %399 = vmatprep.subr.bf16.mxu0 0
  %400 = vmatpush1.bf16.msra.mxu0 0
  %401 = vmatprep.subr.bf16.mxu0 0
  %402 = vmatpush1.bf16.msra.mxu0 0
  %403 = vmatprep.subr.bf16.mxu0 0
  %404 = vmatpush1.bf16.msra.mxu0 0
  %405 = vmatprep.subr.bf16.mxu0 0
  %406 = vmatpush1.bf16.msra.mxu0 0
  %407 = vmatprep.subr.bf16.mxu0 0
  %408 = vmatpush1.bf16.msra.mxu0 0
  %409 = vmatprep.subr.bf16.mxu0 0
  %410 = vmatpush1.bf16.msra.mxu0 0
  %411 = vmatprep.subr.bf16.mxu0 0
  %412 = vmatpush1.bf16.msra.mxu0 0
  %413 = vmatprep.subr.bf16.mxu0 0
  %414 = vmatpush1.bf16.msra.mxu0 0
  %415 = vmatprep.mubr.bf16.mxu0 0
  %416 = vmatmul.mubr.bf16.gmra.mrb[0].mxu0 %v92
  %v417 = vpop.f32.mrb[0].mxu0
  %v418 = vadd.f32 %v141, %v417
  %v419 = vpop.f32.mrb[0].mxu0
  %v420 = vadd.f32 %v145, %v419
  %v421 = vpop.f32.mrb[0].mxu0
  %v422 = vadd.f32 %v141, %v421
  %v423 = vpop.f32.mrb[0].mxu0
  %v424 = vadd.f32 %v145, %v423
  %425 = vmatprep.mubr.bf16.mxu0 0
  %426 = vmatmul.mubr.bf16.gmra.mrb[0].mxu0 %v93
  %v427 = vpop.f32.mrb[0].mxu0
  %v428 = vadd.f32 %v141, %v427
  %v429 = vpop.f32.mrb[0].mxu0
  %v430 = vadd.f32 %v145, %v429
  %v431 = vpop.f32.mrb[0].mxu0
  %v432 = vadd.f32 %v141, %v431
  %v433 = vpop.f32.mrb[0].mxu0
  %v434 = vadd.f32 %v145, %v433
  %435 = vmatprep.mubr.bf16.mxu0 0
  %436 = vmatmul.mubr.bf16.gmra.mrb[0].mxu0 %v94
  %v437 = vpop.f32.mrb[0].mxu0
  %v438 = vadd.f32 %v141, %v437
  %v439 = vpop.f32.mrb[0].mxu0
  %v440 = vadd.f32 %v145, %v439
  %v441 = vpop.f32.mrb[0].mxu0
  %v442 = vadd.f32 %v141, %v441
  %v443 = vpop.f32.mrb[0].mxu0
  %v444 = vadd.f32 %v145, %v443
  %445 = vmatprep.mubr.bf16.mxu0 0
  %446 = vmatmul.mubr.bf16.gmra.mrb[0].mxu0 %v95
  %v447 = vpop.f32.mrb[0].mxu0
  %v448 = vadd.f32 %v141, %v447
  %v449 = vpop.f32.mrb[0].mxu0
  %v450 = vadd.f32 %v145, %v449
  %v451 = vpop.f32.mrb[0].mxu0
  %v452 = vadd.f32 %v141, %v451
  %v453 = vpop.f32.mrb[0].mxu0
  %v454 = vadd.f32 %v145, %v453
  %455 = vdwg.mxu0
  %456 = vst [vmem:[#allocation2] sm:$0xff] %v345
  %457 = vst [vmem:[#allocation2 + $0x8] sm:$0xff] %v347
  %458 = vst [vmem:[#allocation2 + $0x10] sm:$0xff] %v418
  %459 = vst [vmem:[#allocation2 + $0x18] sm:$0xff] %v420
  %460 = vst [vmem:[#allocation2 + $0x20] sm:$0xff] %v349
  %461 = vst [vmem:[#allocation2 + $0x28] sm:$0xff] %v351
  %462 = vst [vmem:[#allocation2 + $0x30] sm:$0xff] %v422
  %463 = vst [vmem:[#allocation2 + $0x38] sm:$0xff] %v424
  %464 = vst [vmem:[#allocation2 + $0x40] sm:$0xff] %v355
  %465 = vst [vmem:[#allocation2 + $0x48] sm:$0xff] %v357
  %466 = vst [vmem:[#allocation2 + $0x50] sm:$0xff] %v428
  %467 = vst [vmem:[#allocation2 + $0x58] sm:$0xff] %v430
  %468 = vst [vmem:[#allocation2 + $0x60] sm:$0xff] %v359
  %469 = vst [vmem:[#allocation2 + $0x68] sm:$0xff] %v361
  %470 = vst [vmem:[#allocation2 + $0x70] sm:$0xff] %v432
  %471 = vst [vmem:[#allocation2 + $0x78] sm:$0xff] %v434
  %472 = vst [vmem:[#allocation2 + $0x80] sm:$0xff] %v365
  %473 = vst [vmem:[#allocation2 + $0x88] sm:$0xff] %v367
  %474 = vst [vmem:[#allocation2 + $0x90] sm:$0xff] %v438
  %475 = vst [vmem:[#allocation2 + $0x98] sm:$0xff] %v440
  %476 = vst [vmem:[#allocation2 + $0xa0] sm:$0xff] %v369
  %477 = vst [vmem:[#allocation2 + $0xa8] sm:$0xff] %v371
  %478 = vst [vmem:[#allocation2 + $0xb0] sm:$0xff] %v442
  %479 = vst [vmem:[#allocation2 + $0xb8] sm:$0xff] %v444
  %480 = vst [vmem:[#allocation2 + $0xc0] sm:$0xff] %v375
  %481 = vst [vmem:[#allocation2 + $0xc8] sm:$0xff] %v377
  %482 = vst [vmem:[#allocation2 + $0xd0] sm:$0xff] %v448
  %483 = vst [vmem:[#allocation2 + $0xd8] sm:$0xff] %v450
  %484 = vst [vmem:[#allocation2 + $0xe0] sm:$0xff] %v379
  %485 = vst [vmem:[#allocation2 + $0xe8] sm:$0xff] %v381
  %486 = vst [vmem:[#allocation2 + $0xf0] sm:$0xff] %v452
  %487 = vst [vmem:[#allocation2 + $0xf8] sm:$0xff] %v454
  %v488 = vld [vmem:[%s2] sm:$0xff]
  %v489 = vld [vmem:[%s5] sm:$0xff]
  %v490 = vld [vmem:[%s5 + $0x8] sm:$0xff]
  %v491 = vld [vmem:[%s5 + $0x10] sm:$0xff]
  %v492 = vld [vmem:[%s5 + $0x18] sm:$0xff]
  %v493 = vld [vmem:[%s5 + $0x20] sm:$0xff]
  %v494 = vld [vmem:[%s5 + $0x28] sm:$0xff]
  %v495 = vld [vmem:[%s5 + $0x30] sm:$0xff]
  %v496 = vld [vmem:[%s5 + $0x38] sm:$0xff]
  %v497 = vld [vmem:[%s5 + $0x40] sm:$0xff]
  %v498 = vld [vmem:[%s5 + $0x48] sm:$0xff]
  %v499 = vld [vmem:[%s5 + $0x50] sm:$0xff]
  %v500 = vld [vmem:[%s5 + $0x58] sm:$0xff]
  %v501 = vld [vmem:[%s5 + $0x60] sm:$0xff]
  %v502 = vld [vmem:[%s5 + $0x68] sm:$0xff]
  %v503 = vld [vmem:[%s5 + $0x70] sm:$0xff]
  %v504 = vld [vmem:[%s5 + $0x78] sm:$0xff]
  %s505 = smul.u32 0, 4
  %s506 = smul.addr %s505, 8
  %s507 = scalar_lea.vmem [#allocation2], %s506
  %v508 = vld [vmem:[%s507] sm:$0xff]
  %v509 = vld [vmem:[%s507 + $0x8] sm:$0xff]
  %v510 = vld [vmem:[%s507 + $0x10] sm:$0xff]
  %v511 = vld [vmem:[%s507 + $0x18] sm:$0xff]
  %v528 = vunpack.c.l.b16 %v489
  %v529 = vunpack.c.h.b16 %v489
  %v530 = vunpack.c.l.b16 %v490
  %v531 = vunpack.c.h.b16 %v490
  %v532 = vunpack.c.l.b16 %v491
  %v533 = vunpack.c.h.b16 %v491
  %v534 = vunpack.c.l.b16 %v492
  %v535 = vunpack.c.h.b16 %v492
  %v536 = vunpack.c.l.b16 %v493
  %v537 = vunpack.c.h.b16 %v493
  %v538 = vunpack.c.l.b16 %v494
  %v539 = vunpack.c.h.b16 %v494
  %v540 = vunpack.c.l.b16 %v495
  %v541 = vunpack.c.h.b16 %v495
  %v542 = vunpack.c.l.b16 %v496
  %v543 = vunpack.c.h.b16 %v496
  %v544 = vunpack.c.l.b16 %v497
  %v545 = vunpack.c.h.b16 %v497
  %v546 = vunpack.c.l.b16 %v498
  %v547 = vunpack.c.h.b16 %v498
  %v548 = vunpack.c.l.b16 %v499
  %v549 = vunpack.c.h.b16 %v499
  %v550 = vunpack.c.l.b16 %v500
  %v551 = vunpack.c.h.b16 %v500
  %v552 = vunpack.c.l.b16 %v501
  %v553 = vunpack.c.h.b16 %v501
  %v554 = vunpack.c.l.b16 %v502
  %v555 = vunpack.c.h.b16 %v502
  %v556 = vunpack.c.l.b16 %v503
  %v557 = vunpack.c.h.b16 %v503
  %v558 = vunpack.c.l.b16 %v504
  %v559 = vunpack.c.h.b16 %v504
  %v560 = vpack.c.b16 %v532, %v528
  %v561 = vpack.c.b16 %v533, %v529
  %v562 = vpack.c.b16 %v534, %v530
  %v563 = vpack.c.b16 %v535, %v531
  %v564 = vpack.c.b16 %v540, %v536
  %v565 = vpack.c.b16 %v541, %v537
  %v566 = vpack.c.b16 %v542, %v538
  %v567 = vpack.c.b16 %v543, %v539
  %v568 = vpack.c.b16 %v548, %v544
  %v569 = vpack.c.b16 %v549, %v545
  %v570 = vpack.c.b16 %v550, %v546
  %v571 = vpack.c.b16 %v551, %v547
  %v572 = vpack.c.b16 %v556, %v552
  %v573 = vpack.c.b16 %v557, %v553
  %v574 = vpack.c.b16 %v558, %v554
  %v575 = vpack.c.b16 %v559, %v555
  %vm592 = vcmask 523264
  %v594 = vsel %vm592, 0, 0
  %596 = vmatprep.subr.bf16.mxu0 %v561
  %597 = vmatpush1.bf16.msra.mxu0 %v560
  %598 = vmatprep.subr.bf16.mxu0 %v565
  %599 = vmatpush1.bf16.msra.mxu0 %v564
  %600 = vmatprep.subr.bf16.mxu0 %v569
  %601 = vmatpush1.bf16.msra.mxu0 %v568
  %602 = vmatprep.subr.bf16.mxu0 %v573
  %603 = vmatpush1.bf16.msra.mxu0 %v572
  %604 = vmatprep.subr.bf16.mxu0 0
  %605 = vmatpush1.bf16.msra.mxu0 0
  %606 = vmatprep.subr.bf16.mxu0 0
  %607 = vmatpush1.bf16.msra.mxu0 0
  %608 = vmatprep.subr.bf16.mxu0 0
  %609 = vmatpush1.bf16.msra.mxu0 0
  %610 = vmatprep.subr.bf16.mxu0 0
  %611 = vmatpush1.bf16.msra.mxu0 0
  %612 = vmatprep.subr.bf16.mxu0 0
  %613 = vmatpush1.bf16.msra.mxu0 0
  %614 = vmatprep.subr.bf16.mxu0 0
  %615 = vmatpush1.bf16.msra.mxu0 0
  %616 = vmatprep.subr.bf16.mxu0 0
  %617 = vmatpush1.bf16.msra.mxu0 0
  %618 = vmatprep.subr.bf16.mxu0 0
  %619 = vmatpush1.bf16.msra.mxu0 0
  %620 = vmatprep.subr.bf16.mxu0 0
  %621 = vmatpush1.bf16.msra.mxu0 0
  %622 = vmatprep.subr.bf16.mxu0 0
  %623 = vmatpush1.bf16.msra.mxu0 0
  %624 = vmatprep.subr.bf16.mxu0 0
  %625 = vmatpush1.bf16.msra.mxu0 0
  %626 = vmatprep.subr.bf16.mxu0 0
  %627 = vmatpush1.bf16.msra.mxu0 0
  %628 = vmatprep.mubr.bf16.mxu0 0
  %629 = vmatmul.mubr.bf16.gmra.mrb[0].mxu0 %v594
  %v630 = vpop.f32.mrb[0].mxu0
  %v631 = vadd.f32 0.0, %v630
  %v632 = vpop.f32.mrb[0].mxu0
  %v633 = vadd.f32 0.0, %v632
  %v634 = vpop.f32.mrb[0].mxu0
  %v635 = vpop.f32.mrb[0].mxu0
  %636 = vdwg.mxu0
  %637 = vmatprep.subr.bf16.mxu0 %v563
  %638 = vmatpush1.bf16.msra.mxu0 %v562
  %639 = vmatprep.subr.bf16.mxu0 %v567
  %640 = vmatpush1.bf16.msra.mxu0 %v566
  %641 = vmatprep.subr.bf16.mxu0 %v571
  %642 = vmatpush1.bf16.msra.mxu0 %v570
  %643 = vmatprep.subr.bf16.mxu0 %v575
  %644 = vmatpush1.bf16.msra.mxu0 %v574
  %645 = vmatprep.subr.bf16.mxu0 0
  %646 = vmatpush1.bf16.msra.mxu0 0
  %647 = vmatprep.subr.bf16.mxu0 0
  %648 = vmatpush1.bf16.msra.mxu0 0
  %649 = vmatprep.subr.bf16.mxu0 0
  %650 = vmatpush1.bf16.msra.mxu0 0
  %651 = vmatprep.subr.bf16.mxu0 0
  %652 = vmatpush1.bf16.msra.mxu0 0
  %653 = vmatprep.subr.bf16.mxu0 0
  %654 = vmatpush1.bf16.msra.mxu0 0
  %655 = vmatprep.subr.bf16.mxu0 0
  %656 = vmatpush1.bf16.msra.mxu0 0
  %657 = vmatprep.subr.bf16.mxu0 0
  %658 = vmatpush1.bf16.msra.mxu0 0
  %659 = vmatprep.subr.bf16.mxu0 0
  %660 = vmatpush1.bf16.msra.mxu0 0
  %661 = vmatprep.subr.bf16.mxu0 0
  %662 = vmatpush1.bf16.msra.mxu0 0
  %663 = vmatprep.subr.bf16.mxu0 0
  %664 = vmatpush1.bf16.msra.mxu0 0
  %665 = vmatprep.subr.bf16.mxu0 0
  %666 = vmatpush1.bf16.msra.mxu0 0
  %667 = vmatprep.subr.bf16.mxu0 0
  %668 = vmatpush1.bf16.msra.mxu0 0
  %669 = vmatprep.mubr.bf16.mxu0 0
  %670 = vmatmul.mubr.bf16.gmra.mrb[0].mxu0 %v594
  %v671 = vpop.f32.mrb[0].mxu0
  %v672 = vadd.f32 0.0, %v671
  %v673 = vpop.f32.mrb[0].mxu0
  %v674 = vadd.f32 0.0, %v673
  %v675 = vpop.f32.mrb[0].mxu0
  %v676 = vpop.f32.mrb[0].mxu0
  %677 = vdwg.mxu0
  %v678 = vadd.f32 %v508, %v631
  %v679 = vadd.f32 %v509, %v633
  %v680 = vadd.f32 %v510, %v672
  %v681 = vadd.f32 %v511, %v674
  %v682 = vmul.f32 %v678, 0.5
  %v683 = vtanh.pop %v682
  %v684 = vmul.f32 %v683, 0.5
  %v685 = vadd.f32 %v684, 0.5
  %v686 = vmul.f32 %v679, 0.5
  %v687 = vtanh.pop %v686
  %v688 = vmul.f32 %v687, 0.5
  %v689 = vadd.f32 %v688, 0.5
  %v690 = vtanh.pop %v680
  %v691 = vmul.f32 %v681, 0.5
  %v692 = vtanh.pop %v691
  %v693 = vmul.f32 %v692, 0.5
  %v694 = vadd.f32 %v693, 0.5
  %v695 = vmul.f32 %v689, 0.0
  %v696 = vmul.f32 %v685, %v690
  %v697 = vadd.f32 %v695, %v696
  %v698 = vtanh.pop %v697
  %v699 = vmul.f32 %v694, %v698
  %vm700 = vcmp.gt.s32.totalorder %v488, 0
  %v701 = vsel %vm700, 1, 0
  %702 = vset.pattern.permute.xlu0 0
  %703 = vperm.xlu0 %702, %v701
  %v704 = vpop.permute.xlu0 %703
  %vm705 = vcmp.eq.s32.totalorder %v704, 1
  %v706 = vsel %vm705, %v699, 0.0
  %v707 = vsel %vm705, %v697, 0.0
  %s708 = smul.u32 1, 4
  %s709 = smul.addr %s708, 8
  %s710 = scalar_lea.vmem [#allocation2], %s709
  %v711 = vld [vmem:[%s710] sm:$0xff]
  %v712 = vld [vmem:[%s710 + $0x8] sm:$0xff]
  %v713 = vld [vmem:[%s710 + $0x10] sm:$0xff]
  %v714 = vld [vmem:[%s710 + $0x18] sm:$0xff]
  %v715 = vpack.c.bf16 %v706, %v706
  %v717 = vsel %vm592, %v715, 0
  %719 = vmatprep.subr.bf16.mxu0 %v561
  %720 = vmatpush1.bf16.msra.mxu0 %v560
  %721 = vmatprep.subr.bf16.mxu0 %v565
  %722 = vmatpush1.bf16.msra.mxu0 %v564
  %723 = vmatprep.subr.bf16.mxu0 %v569
  %724 = vmatpush1.bf16.msra.mxu0 %v568
  %725 = vmatprep.subr.bf16.mxu0 %v573
  %726 = vmatpush1.bf16.msra.mxu0 %v572
  %727 = vmatprep.subr.bf16.mxu0 0
  %728 = vmatpush1.bf16.msra.mxu0 0
  %729 = vmatprep.subr.bf16.mxu0 0
  %730 = vmatpush1.bf16.msra.mxu0 0
  %731 = vmatprep.subr.bf16.mxu0 0
  %732 = vmatpush1.bf16.msra.mxu0 0
  %733 = vmatprep.subr.bf16.mxu0 0
  %734 = vmatpush1.bf16.msra.mxu0 0
  %735 = vmatprep.subr.bf16.mxu0 0
  %736 = vmatpush1.bf16.msra.mxu0 0
  %737 = vmatprep.subr.bf16.mxu0 0
  %738 = vmatpush1.bf16.msra.mxu0 0
  %739 = vmatprep.subr.bf16.mxu0 0
  %740 = vmatpush1.bf16.msra.mxu0 0
  %741 = vmatprep.subr.bf16.mxu0 0
  %742 = vmatpush1.bf16.msra.mxu0 0
  %743 = vmatprep.subr.bf16.mxu0 0
  %744 = vmatpush1.bf16.msra.mxu0 0
  %745 = vmatprep.subr.bf16.mxu0 0
  %746 = vmatpush1.bf16.msra.mxu0 0
  %747 = vmatprep.subr.bf16.mxu0 0
  %748 = vmatpush1.bf16.msra.mxu0 0
  %749 = vmatprep.subr.bf16.mxu0 0
  %750 = vmatpush1.bf16.msra.mxu0 0
  %751 = vmatprep.mubr.bf16.mxu0 0
  %752 = vmatmul.mubr.bf16.gmra.mrb[0].mxu0 %v717
  %v753 = vpop.f32.mrb[0].mxu0
  %v754 = vadd.f32 0.0, %v753
  %v755 = vpop.f32.mrb[0].mxu0
  %v756 = vadd.f32 0.0, %v755
  %v757 = vpop.f32.mrb[0].mxu0
  %v758 = vpop.f32.mrb[0].mxu0
  %759 = vdwg.mxu0
  %760 = vmatprep.subr.bf16.mxu0 %v563
  %761 = vmatpush1.bf16.msra.mxu0 %v562
  %762 = vmatprep.subr.bf16.mxu0 %v567
  %763 = vmatpush1.bf16.msra.mxu0 %v566
  %764 = vmatprep.subr.bf16.mxu0 %v571
  %765 = vmatpush1.bf16.msra.mxu0 %v570
  %766 = vmatprep.subr.bf16.mxu0 %v575
  %767 = vmatpush1.bf16.msra.mxu0 %v574
  %768 = vmatprep.subr.bf16.mxu0 0
  %769 = vmatpush1.bf16.msra.mxu0 0
  %770 = vmatprep.subr.bf16.mxu0 0
  %771 = vmatpush1.bf16.msra.mxu0 0
  %772 = vmatprep.subr.bf16.mxu0 0
  %773 = vmatpush1.bf16.msra.mxu0 0
  %774 = vmatprep.subr.bf16.mxu0 0
  %775 = vmatpush1.bf16.msra.mxu0 0
  %776 = vmatprep.subr.bf16.mxu0 0
  %777 = vmatpush1.bf16.msra.mxu0 0
  %778 = vmatprep.subr.bf16.mxu0 0
  %779 = vmatpush1.bf16.msra.mxu0 0
  %780 = vmatprep.subr.bf16.mxu0 0
  %781 = vmatpush1.bf16.msra.mxu0 0
  %782 = vmatprep.subr.bf16.mxu0 0
  %783 = vmatpush1.bf16.msra.mxu0 0
  %784 = vmatprep.subr.bf16.mxu0 0
  %785 = vmatpush1.bf16.msra.mxu0 0
  %786 = vmatprep.subr.bf16.mxu0 0
  %787 = vmatpush1.bf16.msra.mxu0 0
  %788 = vmatprep.subr.bf16.mxu0 0
  %789 = vmatpush1.bf16.msra.mxu0 0
  %790 = vmatprep.subr.bf16.mxu0 0
  %791 = vmatpush1.bf16.msra.mxu0 0
  %792 = vmatprep.mubr.bf16.mxu0 0
  %793 = vmatmul.mubr.bf16.gmra.mrb[0].mxu0 %v717
  %v794 = vpop.f32.mrb[0].mxu0
  %v795 = vadd.f32 0.0, %v794
  %v796 = vpop.f32.mrb[0].mxu0
  %v797 = vadd.f32 0.0, %v796
  %v798 = vpop.f32.mrb[0].mxu0
  %v799 = vpop.f32.mrb[0].mxu0
  %800 = vdwg.mxu0
  %v801 = vadd.f32 %v711, %v754
  %v802 = vadd.f32 %v712, %v756
  %v803 = vadd.f32 %v713, %v795
  %v804 = vadd.f32 %v714, %v797
  %v805 = vmul.f32 %v801, 0.5
  %v806 = vtanh.pop %v805
  %v807 = vmul.f32 %v806, 0.5
  %v808 = vadd.f32 %v807, 0.5
  %v809 = vmul.f32 %v802, 0.5
  %v810 = vtanh.pop %v809
  %v811 = vmul.f32 %v810, 0.5
  %v812 = vadd.f32 %v811, 0.5
  %v813 = vtanh.pop %v803
  %v814 = vmul.f32 %v804, 0.5
  %v815 = vtanh.pop %v814
  %v816 = vmul.f32 %v815, 0.5
  %v817 = vadd.f32 %v816, 0.5
  %v818 = vmul.f32 %v812, %v707
  %v819 = vmul.f32 %v808, %v813
  %v820 = vadd.f32 %v818, %v819
  %v821 = vtanh.pop %v820
  %v822 = vmul.f32 %v817, %v821
  %vm823 = vcmp.gt.s32.totalorder %v488, 1
  %v824 = vsel %vm823, 1, 0
  %825 = vset.pattern.permute.xlu0 0
  %826 = vperm.xlu0 %825, %v824
  %v827 = vpop.permute.xlu0 %826
  %vm828 = vcmp.eq.s32.totalorder %v827, 1
  %v829 = vsel %vm828, %v822, %v706
  %v830 = vsel %vm828, %v820, %v707
  %s831 = smul.u32 2, 4
  %s832 = smul.addr %s831, 8
  %s833 = scalar_lea.vmem [#allocation2], %s832
  %v834 = vld [vmem:[%s833] sm:$0xff]
  %v835 = vld [vmem:[%s833 + $0x8] sm:$0xff]
  %v836 = vld [vmem:[%s833 + $0x10] sm:$0xff]
  %v837 = vld [vmem:[%s833 + $0x18] sm:$0xff]
  %v838 = vpack.c.bf16 %v829, %v829
  %v840 = vsel %vm592, %v838, 0
  %842 = vmatprep.subr.bf16.mxu0 %v561
  %843 = vmatpush1.bf16.msra.mxu0 %v560
  %844 = vmatprep.subr.bf16.mxu0 %v565
  %845 = vmatpush1.bf16.msra.mxu0 %v564
  %846 = vmatprep.subr.bf16.mxu0 %v569
  %847 = vmatpush1.bf16.msra.mxu0 %v568
  %848 = vmatprep.subr.bf16.mxu0 %v573
  %849 = vmatpush1.bf16.msra.mxu0 %v572
  %850 = vmatprep.subr.bf16.mxu0 0
  %851 = vmatpush1.bf16.msra.mxu0 0
  %852 = vmatprep.subr.bf16.mxu0 0
  %853 = vmatpush1.bf16.msra.mxu0 0
  %854 = vmatprep.subr.bf16.mxu0 0
  %855 = vmatpush1.bf16.msra.mxu0 0
  %856 = vmatprep.subr.bf16.mxu0 0
  %857 = vmatpush1.bf16.msra.mxu0 0
  %858 = vmatprep.subr.bf16.mxu0 0
  %859 = vmatpush1.bf16.msra.mxu0 0
  %860 = vmatprep.subr.bf16.mxu0 0
  %861 = vmatpush1.bf16.msra.mxu0 0
  %862 = vmatprep.subr.bf16.mxu0 0
  %863 = vmatpush1.bf16.msra.mxu0 0
  %864 = vmatprep.subr.bf16.mxu0 0
  %865 = vmatpush1.bf16.msra.mxu0 0
  %866 = vmatprep.subr.bf16.mxu0 0
  %867 = vmatpush1.bf16.msra.mxu0 0
  %868 = vmatprep.subr.bf16.mxu0 0
  %869 = vmatpush1.bf16.msra.mxu0 0
  %870 = vmatprep.subr.bf16.mxu0 0
  %871 = vmatpush1.bf16.msra.mxu0 0
  %872 = vmatprep.subr.bf16.mxu0 0
  %873 = vmatpush1.bf16.msra.mxu0 0
  %874 = vmatprep.mubr.bf16.mxu0 0
  %875 = vmatmul.mubr.bf16.gmra.mrb[0].mxu0 %v840
  %v876 = vpop.f32.mrb[0].mxu0
  %v877 = vadd.f32 0.0, %v876
  %v878 = vpop.f32.mrb[0].mxu0
  %v879 = vadd.f32 0.0, %v878
  %v880 = vpop.f32.mrb[0].mxu0
  %v881 = vpop.f32.mrb[0].mxu0
  %882 = vdwg.mxu0
  %883 = vmatprep.subr.bf16.mxu0 %v563
  %884 = vmatpush1.bf16.msra.mxu0 %v562
  %885 = vmatprep.subr.bf16.mxu0 %v567
  %886 = vmatpush1.bf16.msra.mxu0 %v566
  %887 = vmatprep.subr.bf16.mxu0 %v571
  %888 = vmatpush1.bf16.msra.mxu0 %v570
  %889 = vmatprep.subr.bf16.mxu0 %v575
  %890 = vmatpush1.bf16.msra.mxu0 %v574
  %891 = vmatprep.subr.bf16.mxu0 0
  %892 = vmatpush1.bf16.msra.mxu0 0
  %893 = vmatprep.subr.bf16.mxu0 0
  %894 = vmatpush1.bf16.msra.mxu0 0
  %895 = vmatprep.subr.bf16.mxu0 0
  %896 = vmatpush1.bf16.msra.mxu0 0
  %897 = vmatprep.subr.bf16.mxu0 0
  %898 = vmatpush1.bf16.msra.mxu0 0
  %899 = vmatprep.subr.bf16.mxu0 0
  %900 = vmatpush1.bf16.msra.mxu0 0
  %901 = vmatprep.subr.bf16.mxu0 0
  %902 = vmatpush1.bf16.msra.mxu0 0
  %903 = vmatprep.subr.bf16.mxu0 0
  %904 = vmatpush1.bf16.msra.mxu0 0
  %905 = vmatprep.subr.bf16.mxu0 0
  %906 = vmatpush1.bf16.msra.mxu0 0
  %907 = vmatprep.subr.bf16.mxu0 0
  %908 = vmatpush1.bf16.msra.mxu0 0
  %909 = vmatprep.subr.bf16.mxu0 0
  %910 = vmatpush1.bf16.msra.mxu0 0
  %911 = vmatprep.subr.bf16.mxu0 0
  %912 = vmatpush1.bf16.msra.mxu0 0
  %913 = vmatprep.subr.bf16.mxu0 0
  %914 = vmatpush1.bf16.msra.mxu0 0
  %915 = vmatprep.mubr.bf16.mxu0 0
  %916 = vmatmul.mubr.bf16.gmra.mrb[0].mxu0 %v840
  %v917 = vpop.f32.mrb[0].mxu0
  %v918 = vadd.f32 0.0, %v917
  %v919 = vpop.f32.mrb[0].mxu0
  %v920 = vadd.f32 0.0, %v919
  %v921 = vpop.f32.mrb[0].mxu0
  %v922 = vpop.f32.mrb[0].mxu0
  %923 = vdwg.mxu0
  %v924 = vadd.f32 %v834, %v877
  %v925 = vadd.f32 %v835, %v879
  %v926 = vadd.f32 %v836, %v918
  %v927 = vadd.f32 %v837, %v920
  %v928 = vmul.f32 %v924, 0.5
  %v929 = vtanh.pop %v928
  %v930 = vmul.f32 %v929, 0.5
  %v931 = vadd.f32 %v930, 0.5
  %v932 = vmul.f32 %v925, 0.5
  %v933 = vtanh.pop %v932
  %v934 = vmul.f32 %v933, 0.5
  %v935 = vadd.f32 %v934, 0.5
  %v936 = vtanh.pop %v926
  %v937 = vmul.f32 %v927, 0.5
  %v938 = vtanh.pop %v937
  %v939 = vmul.f32 %v938, 0.5
  %v940 = vadd.f32 %v939, 0.5
  %v941 = vmul.f32 %v935, %v830
  %v942 = vmul.f32 %v931, %v936
  %v943 = vadd.f32 %v941, %v942
  %v944 = vtanh.pop %v943
  %v945 = vmul.f32 %v940, %v944
  %vm946 = vcmp.gt.s32.totalorder %v488, 2
  %v947 = vsel %vm946, 1, 0
  %948 = vset.pattern.permute.xlu0 0
  %949 = vperm.xlu0 %948, %v947
  %v950 = vpop.permute.xlu0 %949
  %vm951 = vcmp.eq.s32.totalorder %v950, 1
  %v952 = vsel %vm951, %v945, %v829
  %v953 = vsel %vm951, %v943, %v830
  %s954 = smul.u32 3, 4
  %s955 = smul.addr %s954, 8
  %s956 = scalar_lea.vmem [#allocation2], %s955
  %v957 = vld [vmem:[%s956] sm:$0xff]
  %v958 = vld [vmem:[%s956 + $0x8] sm:$0xff]
  %v959 = vld [vmem:[%s956 + $0x10] sm:$0xff]
  %v960 = vld [vmem:[%s956 + $0x18] sm:$0xff]
  %v961 = vpack.c.bf16 %v952, %v952
  %v963 = vsel %vm592, %v961, 0
  %965 = vmatprep.subr.bf16.mxu0 %v561
  %966 = vmatpush1.bf16.msra.mxu0 %v560
  %967 = vmatprep.subr.bf16.mxu0 %v565
  %968 = vmatpush1.bf16.msra.mxu0 %v564
  %969 = vmatprep.subr.bf16.mxu0 %v569
  %970 = vmatpush1.bf16.msra.mxu0 %v568
  %971 = vmatprep.subr.bf16.mxu0 %v573
  %972 = vmatpush1.bf16.msra.mxu0 %v572
  %973 = vmatprep.subr.bf16.mxu0 0
  %974 = vmatpush1.bf16.msra.mxu0 0
  %975 = vmatprep.subr.bf16.mxu0 0
  %976 = vmatpush1.bf16.msra.mxu0 0
  %977 = vmatprep.subr.bf16.mxu0 0
  %978 = vmatpush1.bf16.msra.mxu0 0
  %979 = vmatprep.subr.bf16.mxu0 0
  %980 = vmatpush1.bf16.msra.mxu0 0
  %981 = vmatprep.subr.bf16.mxu0 0
  %982 = vmatpush1.bf16.msra.mxu0 0
  %983 = vmatprep.subr.bf16.mxu0 0
  %984 = vmatpush1.bf16.msra.mxu0 0
  %985 = vmatprep.subr.bf16.mxu0 0
  %986 = vmatpush1.bf16.msra.mxu0 0
  %987 = vmatprep.subr.bf16.mxu0 0
  %988 = vmatpush1.bf16.msra.mxu0 0
  %989 = vmatprep.subr.bf16.mxu0 0
  %990 = vmatpush1.bf16.msra.mxu0 0
  %991 = vmatprep.subr.bf16.mxu0 0
  %992 = vmatpush1.bf16.msra.mxu0 0
  %993 = vmatprep.subr.bf16.mxu0 0
  %994 = vmatpush1.bf16.msra.mxu0 0
  %995 = vmatprep.subr.bf16.mxu0 0
  %996 = vmatpush1.bf16.msra.mxu0 0
  %997 = vmatprep.mubr.bf16.mxu0 0
  %998 = vmatmul.mubr.bf16.gmra.mrb[0].mxu0 %v963
  %v999 = vpop.f32.mrb[0].mxu0
  %v1000 = vadd.f32 0.0, %v999
  %v1001 = vpop.f32.mrb[0].mxu0
  %v1002 = vadd.f32 0.0, %v1001
  %v1003 = vpop.f32.mrb[0].mxu0
  %v1004 = vpop.f32.mrb[0].mxu0
  %1005 = vdwg.mxu0
  %1006 = vmatprep.subr.bf16.mxu0 %v563
  %1007 = vmatpush1.bf16.msra.mxu0 %v562
  %1008 = vmatprep.subr.bf16.mxu0 %v567
  %1009 = vmatpush1.bf16.msra.mxu0 %v566
  %1010 = vmatprep.subr.bf16.mxu0 %v571
  %1011 = vmatpush1.bf16.msra.mxu0 %v570
  %1012 = vmatprep.subr.bf16.mxu0 %v575
  %1013 = vmatpush1.bf16.msra.mxu0 %v574
  %1014 = vmatprep.subr.bf16.mxu0 0
  %1015 = vmatpush1.bf16.msra.mxu0 0
  %1016 = vmatprep.subr.bf16.mxu0 0
  %1017 = vmatpush1.bf16.msra.mxu0 0
  %1018 = vmatprep.subr.bf16.mxu0 0
  %1019 = vmatpush1.bf16.msra.mxu0 0
  %1020 = vmatprep.subr.bf16.mxu0 0
  %1021 = vmatpush1.bf16.msra.mxu0 0
  %1022 = vmatprep.subr.bf16.mxu0 0
  %1023 = vmatpush1.bf16.msra.mxu0 0
  %1024 = vmatprep.subr.bf16.mxu0 0
  %1025 = vmatpush1.bf16.msra.mxu0 0
  %1026 = vmatprep.subr.bf16.mxu0 0
  %1027 = vmatpush1.bf16.msra.mxu0 0
  %1028 = vmatprep.subr.bf16.mxu0 0
  %1029 = vmatpush1.bf16.msra.mxu0 0
  %1030 = vmatprep.subr.bf16.mxu0 0
  %1031 = vmatpush1.bf16.msra.mxu0 0
  %1032 = vmatprep.subr.bf16.mxu0 0
  %1033 = vmatpush1.bf16.msra.mxu0 0
  %1034 = vmatprep.subr.bf16.mxu0 0
  %1035 = vmatpush1.bf16.msra.mxu0 0
  %1036 = vmatprep.subr.bf16.mxu0 0
  %1037 = vmatpush1.bf16.msra.mxu0 0
  %1038 = vmatprep.mubr.bf16.mxu0 0
  %1039 = vmatmul.mubr.bf16.gmra.mrb[0].mxu0 %v963
  %v1040 = vpop.f32.mrb[0].mxu0
  %v1041 = vadd.f32 0.0, %v1040
  %v1042 = vpop.f32.mrb[0].mxu0
  %v1043 = vadd.f32 0.0, %v1042
  %v1044 = vpop.f32.mrb[0].mxu0
  %v1045 = vpop.f32.mrb[0].mxu0
  %1046 = vdwg.mxu0
  %v1047 = vadd.f32 %v957, %v1000
  %v1048 = vadd.f32 %v958, %v1002
  %v1049 = vadd.f32 %v959, %v1041
  %v1050 = vadd.f32 %v960, %v1043
  %v1051 = vmul.f32 %v1047, 0.5
  %v1052 = vtanh.pop %v1051
  %v1053 = vmul.f32 %v1052, 0.5
  %v1054 = vadd.f32 %v1053, 0.5
  %v1055 = vmul.f32 %v1048, 0.5
  %v1056 = vtanh.pop %v1055
  %v1057 = vmul.f32 %v1056, 0.5
  %v1058 = vadd.f32 %v1057, 0.5
  %v1059 = vtanh.pop %v1049
  %v1060 = vmul.f32 %v1050, 0.5
  %v1061 = vtanh.pop %v1060
  %v1062 = vmul.f32 %v1061, 0.5
  %v1063 = vadd.f32 %v1062, 0.5
  %v1064 = vmul.f32 %v1058, %v953
  %v1065 = vmul.f32 %v1054, %v1059
  %v1066 = vadd.f32 %v1064, %v1065
  %v1067 = vtanh.pop %v1066
  %v1068 = vmul.f32 %v1063, %v1067
  %vm1069 = vcmp.gt.s32.totalorder %v488, 3
  %v1070 = vsel %vm1069, 1, 0
  %1071 = vset.pattern.permute.xlu0 0
  %1072 = vperm.xlu0 %1071, %v1070
  %v1073 = vpop.permute.xlu0 %1072
  %vm1074 = vcmp.eq.s32.totalorder %v1073, 1
  %v1075 = vsel %vm1074, %v1068, %v952
  %v1076 = vsel %vm1074, %v1066, %v953
  %s1077 = smul.u32 4, 4
  %s1078 = smul.addr %s1077, 8
  %s1079 = scalar_lea.vmem [#allocation2], %s1078
  %v1080 = vld [vmem:[%s1079] sm:$0xff]
  %v1081 = vld [vmem:[%s1079 + $0x8] sm:$0xff]
  %v1082 = vld [vmem:[%s1079 + $0x10] sm:$0xff]
  %v1083 = vld [vmem:[%s1079 + $0x18] sm:$0xff]
  %v1084 = vpack.c.bf16 %v1075, %v1075
  %v1086 = vsel %vm592, %v1084, 0
  %1088 = vmatprep.subr.bf16.mxu0 %v561
  %1089 = vmatpush1.bf16.msra.mxu0 %v560
  %1090 = vmatprep.subr.bf16.mxu0 %v565
  %1091 = vmatpush1.bf16.msra.mxu0 %v564
  %1092 = vmatprep.subr.bf16.mxu0 %v569
  %1093 = vmatpush1.bf16.msra.mxu0 %v568
  %1094 = vmatprep.subr.bf16.mxu0 %v573
  %1095 = vmatpush1.bf16.msra.mxu0 %v572
  %1096 = vmatprep.subr.bf16.mxu0 0
  %1097 = vmatpush1.bf16.msra.mxu0 0
  %1098 = vmatprep.subr.bf16.mxu0 0
  %1099 = vmatpush1.bf16.msra.mxu0 0
  %1100 = vmatprep.subr.bf16.mxu0 0
  %1101 = vmatpush1.bf16.msra.mxu0 0
  %1102 = vmatprep.subr.bf16.mxu0 0
  %1103 = vmatpush1.bf16.msra.mxu0 0
  %1104 = vmatprep.subr.bf16.mxu0 0
  %1105 = vmatpush1.bf16.msra.mxu0 0
  %1106 = vmatprep.subr.bf16.mxu0 0
  %1107 = vmatpush1.bf16.msra.mxu0 0
  %1108 = vmatprep.subr.bf16.mxu0 0
  %1109 = vmatpush1.bf16.msra.mxu0 0
  %1110 = vmatprep.subr.bf16.mxu0 0
  %1111 = vmatpush1.bf16.msra.mxu0 0
  %1112 = vmatprep.subr.bf16.mxu0 0
  %1113 = vmatpush1.bf16.msra.mxu0 0
  %1114 = vmatprep.subr.bf16.mxu0 0
  %1115 = vmatpush1.bf16.msra.mxu0 0
  %1116 = vmatprep.subr.bf16.mxu0 0
  %1117 = vmatpush1.bf16.msra.mxu0 0
  %1118 = vmatprep.subr.bf16.mxu0 0
  %1119 = vmatpush1.bf16.msra.mxu0 0
  %1120 = vmatprep.mubr.bf16.mxu0 0
  %1121 = vmatmul.mubr.bf16.gmra.mrb[0].mxu0 %v1086
  %v1122 = vpop.f32.mrb[0].mxu0
  %v1123 = vadd.f32 0.0, %v1122
  %v1124 = vpop.f32.mrb[0].mxu0
  %v1125 = vadd.f32 0.0, %v1124
  %v1126 = vpop.f32.mrb[0].mxu0
  %v1127 = vpop.f32.mrb[0].mxu0
  %1128 = vdwg.mxu0
  %1129 = vmatprep.subr.bf16.mxu0 %v563
  %1130 = vmatpush1.bf16.msra.mxu0 %v562
  %1131 = vmatprep.subr.bf16.mxu0 %v567
  %1132 = vmatpush1.bf16.msra.mxu0 %v566
  %1133 = vmatprep.subr.bf16.mxu0 %v571
  %1134 = vmatpush1.bf16.msra.mxu0 %v570
  %1135 = vmatprep.subr.bf16.mxu0 %v575
  %1136 = vmatpush1.bf16.msra.mxu0 %v574
  %1137 = vmatprep.subr.bf16.mxu0 0
  %1138 = vmatpush1.bf16.msra.mxu0 0
  %1139 = vmatprep.subr.bf16.mxu0 0
  %1140 = vmatpush1.bf16.msra.mxu0 0
  %1141 = vmatprep.subr.bf16.mxu0 0
  %1142 = vmatpush1.bf16.msra.mxu0 0
  %1143 = vmatprep.subr.bf16.mxu0 0
  %1144 = vmatpush1.bf16.msra.mxu0 0
  %1145 = vmatprep.subr.bf16.mxu0 0
  %1146 = vmatpush1.bf16.msra.mxu0 0
  %1147 = vmatprep.subr.bf16.mxu0 0
  %1148 = vmatpush1.bf16.msra.mxu0 0
  %1149 = vmatprep.subr.bf16.mxu0 0
  %1150 = vmatpush1.bf16.msra.mxu0 0
  %1151 = vmatprep.subr.bf16.mxu0 0
  %1152 = vmatpush1.bf16.msra.mxu0 0
  %1153 = vmatprep.subr.bf16.mxu0 0
  %1154 = vmatpush1.bf16.msra.mxu0 0
  %1155 = vmatprep.subr.bf16.mxu0 0
  %1156 = vmatpush1.bf16.msra.mxu0 0
  %1157 = vmatprep.subr.bf16.mxu0 0
  %1158 = vmatpush1.bf16.msra.mxu0 0
  %1159 = vmatprep.subr.bf16.mxu0 0
  %1160 = vmatpush1.bf16.msra.mxu0 0
  %1161 = vmatprep.mubr.bf16.mxu0 0
  %1162 = vmatmul.mubr.bf16.gmra.mrb[0].mxu0 %v1086
  %v1163 = vpop.f32.mrb[0].mxu0
  %v1164 = vadd.f32 0.0, %v1163
  %v1165 = vpop.f32.mrb[0].mxu0
  %v1166 = vadd.f32 0.0, %v1165
  %v1167 = vpop.f32.mrb[0].mxu0
  %v1168 = vpop.f32.mrb[0].mxu0
  %1169 = vdwg.mxu0
  %v1170 = vadd.f32 %v1080, %v1123
  %v1171 = vadd.f32 %v1081, %v1125
  %v1172 = vadd.f32 %v1082, %v1164
  %v1173 = vadd.f32 %v1083, %v1166
  %v1174 = vmul.f32 %v1170, 0.5
  %v1175 = vtanh.pop %v1174
  %v1176 = vmul.f32 %v1175, 0.5
  %v1177 = vadd.f32 %v1176, 0.5
  %v1178 = vmul.f32 %v1171, 0.5
  %v1179 = vtanh.pop %v1178
  %v1180 = vmul.f32 %v1179, 0.5
  %v1181 = vadd.f32 %v1180, 0.5
  %v1182 = vtanh.pop %v1172
  %v1183 = vmul.f32 %v1173, 0.5
  %v1184 = vtanh.pop %v1183
  %v1185 = vmul.f32 %v1184, 0.5
  %v1186 = vadd.f32 %v1185, 0.5
  %v1187 = vmul.f32 %v1181, %v1076
  %v1188 = vmul.f32 %v1177, %v1182
  %v1189 = vadd.f32 %v1187, %v1188
  %v1190 = vtanh.pop %v1189
  %v1191 = vmul.f32 %v1186, %v1190
  %vm1192 = vcmp.gt.s32.totalorder %v488, 4
  %v1193 = vsel %vm1192, 1, 0
  %1194 = vset.pattern.permute.xlu0 0
  %1195 = vperm.xlu0 %1194, %v1193
  %v1196 = vpop.permute.xlu0 %1195
  %vm1197 = vcmp.eq.s32.totalorder %v1196, 1
  %v1198 = vsel %vm1197, %v1191, %v1075
  %v1199 = vsel %vm1197, %v1189, %v1076
  %s1200 = smul.u32 5, 4
  %s1201 = smul.addr %s1200, 8
  %s1202 = scalar_lea.vmem [#allocation2], %s1201
  %v1203 = vld [vmem:[%s1202] sm:$0xff]
  %v1204 = vld [vmem:[%s1202 + $0x8] sm:$0xff]
  %v1205 = vld [vmem:[%s1202 + $0x10] sm:$0xff]
  %v1206 = vld [vmem:[%s1202 + $0x18] sm:$0xff]
  %v1207 = vpack.c.bf16 %v1198, %v1198
  %v1209 = vsel %vm592, %v1207, 0
  %1211 = vmatprep.subr.bf16.mxu0 %v561
  %1212 = vmatpush1.bf16.msra.mxu0 %v560
  %1213 = vmatprep.subr.bf16.mxu0 %v565
  %1214 = vmatpush1.bf16.msra.mxu0 %v564
  %1215 = vmatprep.subr.bf16.mxu0 %v569
  %1216 = vmatpush1.bf16.msra.mxu0 %v568
  %1217 = vmatprep.subr.bf16.mxu0 %v573
  %1218 = vmatpush1.bf16.msra.mxu0 %v572
  %1219 = vmatprep.subr.bf16.mxu0 0
  %1220 = vmatpush1.bf16.msra.mxu0 0
  %1221 = vmatprep.subr.bf16.mxu0 0
  %1222 = vmatpush1.bf16.msra.mxu0 0
  %1223 = vmatprep.subr.bf16.mxu0 0
  %1224 = vmatpush1.bf16.msra.mxu0 0
  %1225 = vmatprep.subr.bf16.mxu0 0
  %1226 = vmatpush1.bf16.msra.mxu0 0
  %1227 = vmatprep.subr.bf16.mxu0 0
  %1228 = vmatpush1.bf16.msra.mxu0 0
  %1229 = vmatprep.subr.bf16.mxu0 0
  %1230 = vmatpush1.bf16.msra.mxu0 0
  %1231 = vmatprep.subr.bf16.mxu0 0
  %1232 = vmatpush1.bf16.msra.mxu0 0
  %1233 = vmatprep.subr.bf16.mxu0 0
  %1234 = vmatpush1.bf16.msra.mxu0 0
  %1235 = vmatprep.subr.bf16.mxu0 0
  %1236 = vmatpush1.bf16.msra.mxu0 0
  %1237 = vmatprep.subr.bf16.mxu0 0
  %1238 = vmatpush1.bf16.msra.mxu0 0
  %1239 = vmatprep.subr.bf16.mxu0 0
  %1240 = vmatpush1.bf16.msra.mxu0 0
  %1241 = vmatprep.subr.bf16.mxu0 0
  %1242 = vmatpush1.bf16.msra.mxu0 0
  %1243 = vmatprep.mubr.bf16.mxu0 0
  %1244 = vmatmul.mubr.bf16.gmra.mrb[0].mxu0 %v1209
  %v1245 = vpop.f32.mrb[0].mxu0
  %v1246 = vadd.f32 0.0, %v1245
  %v1247 = vpop.f32.mrb[0].mxu0
  %v1248 = vadd.f32 0.0, %v1247
  %v1249 = vpop.f32.mrb[0].mxu0
  %v1250 = vpop.f32.mrb[0].mxu0
  %1251 = vdwg.mxu0
  %1252 = vmatprep.subr.bf16.mxu0 %v563
  %1253 = vmatpush1.bf16.msra.mxu0 %v562
  %1254 = vmatprep.subr.bf16.mxu0 %v567
  %1255 = vmatpush1.bf16.msra.mxu0 %v566
  %1256 = vmatprep.subr.bf16.mxu0 %v571
  %1257 = vmatpush1.bf16.msra.mxu0 %v570
  %1258 = vmatprep.subr.bf16.mxu0 %v575
  %1259 = vmatpush1.bf16.msra.mxu0 %v574
  %1260 = vmatprep.subr.bf16.mxu0 0
  %1261 = vmatpush1.bf16.msra.mxu0 0
  %1262 = vmatprep.subr.bf16.mxu0 0
  %1263 = vmatpush1.bf16.msra.mxu0 0
  %1264 = vmatprep.subr.bf16.mxu0 0
  %1265 = vmatpush1.bf16.msra.mxu0 0
  %1266 = vmatprep.subr.bf16.mxu0 0
  %1267 = vmatpush1.bf16.msra.mxu0 0
  %1268 = vmatprep.subr.bf16.mxu0 0
  %1269 = vmatpush1.bf16.msra.mxu0 0
  %1270 = vmatprep.subr.bf16.mxu0 0
  %1271 = vmatpush1.bf16.msra.mxu0 0
  %1272 = vmatprep.subr.bf16.mxu0 0
  %1273 = vmatpush1.bf16.msra.mxu0 0
  %1274 = vmatprep.subr.bf16.mxu0 0
  %1275 = vmatpush1.bf16.msra.mxu0 0
  %1276 = vmatprep.subr.bf16.mxu0 0
  %1277 = vmatpush1.bf16.msra.mxu0 0
  %1278 = vmatprep.subr.bf16.mxu0 0
  %1279 = vmatpush1.bf16.msra.mxu0 0
  %1280 = vmatprep.subr.bf16.mxu0 0
  %1281 = vmatpush1.bf16.msra.mxu0 0
  %1282 = vmatprep.subr.bf16.mxu0 0
  %1283 = vmatpush1.bf16.msra.mxu0 0
  %1284 = vmatprep.mubr.bf16.mxu0 0
  %1285 = vmatmul.mubr.bf16.gmra.mrb[0].mxu0 %v1209
  %v1286 = vpop.f32.mrb[0].mxu0
  %v1287 = vadd.f32 0.0, %v1286
  %v1288 = vpop.f32.mrb[0].mxu0
  %v1289 = vadd.f32 0.0, %v1288
  %v1290 = vpop.f32.mrb[0].mxu0
  %v1291 = vpop.f32.mrb[0].mxu0
  %1292 = vdwg.mxu0
  %v1293 = vadd.f32 %v1203, %v1246
  %v1294 = vadd.f32 %v1204, %v1248
  %v1295 = vadd.f32 %v1205, %v1287
  %v1296 = vadd.f32 %v1206, %v1289
  %v1297 = vmul.f32 %v1293, 0.5
  %v1298 = vtanh.pop %v1297
  %v1299 = vmul.f32 %v1298, 0.5
  %v1300 = vadd.f32 %v1299, 0.5
  %v1301 = vmul.f32 %v1294, 0.5
  %v1302 = vtanh.pop %v1301
  %v1303 = vmul.f32 %v1302, 0.5
  %v1304 = vadd.f32 %v1303, 0.5
  %v1305 = vtanh.pop %v1295
  %v1306 = vmul.f32 %v1296, 0.5
  %v1307 = vtanh.pop %v1306
  %v1308 = vmul.f32 %v1307, 0.5
  %v1309 = vadd.f32 %v1308, 0.5
  %v1310 = vmul.f32 %v1304, %v1199
  %v1311 = vmul.f32 %v1300, %v1305
  %v1312 = vadd.f32 %v1310, %v1311
  %v1313 = vtanh.pop %v1312
  %v1314 = vmul.f32 %v1309, %v1313
  %vm1315 = vcmp.gt.s32.totalorder %v488, 5
  %v1316 = vsel %vm1315, 1, 0
  %1317 = vset.pattern.permute.xlu0 0
  %1318 = vperm.xlu0 %1317, %v1316
  %v1319 = vpop.permute.xlu0 %1318
  %vm1320 = vcmp.eq.s32.totalorder %v1319, 1
  %v1321 = vsel %vm1320, %v1314, %v1198
  %v1322 = vsel %vm1320, %v1312, %v1199
  %s1323 = smul.u32 6, 4
  %s1324 = smul.addr %s1323, 8
  %s1325 = scalar_lea.vmem [#allocation2], %s1324
  %v1326 = vld [vmem:[%s1325] sm:$0xff]
  %v1327 = vld [vmem:[%s1325 + $0x8] sm:$0xff]
  %v1328 = vld [vmem:[%s1325 + $0x10] sm:$0xff]
  %v1329 = vld [vmem:[%s1325 + $0x18] sm:$0xff]
  %v1330 = vpack.c.bf16 %v1321, %v1321
  %v1332 = vsel %vm592, %v1330, 0
  %1334 = vmatprep.subr.bf16.mxu0 %v561
  %1335 = vmatpush1.bf16.msra.mxu0 %v560
  %1336 = vmatprep.subr.bf16.mxu0 %v565
  %1337 = vmatpush1.bf16.msra.mxu0 %v564
  %1338 = vmatprep.subr.bf16.mxu0 %v569
  %1339 = vmatpush1.bf16.msra.mxu0 %v568
  %1340 = vmatprep.subr.bf16.mxu0 %v573
  %1341 = vmatpush1.bf16.msra.mxu0 %v572
  %1342 = vmatprep.subr.bf16.mxu0 0
  %1343 = vmatpush1.bf16.msra.mxu0 0
  %1344 = vmatprep.subr.bf16.mxu0 0
  %1345 = vmatpush1.bf16.msra.mxu0 0
  %1346 = vmatprep.subr.bf16.mxu0 0
  %1347 = vmatpush1.bf16.msra.mxu0 0
  %1348 = vmatprep.subr.bf16.mxu0 0
  %1349 = vmatpush1.bf16.msra.mxu0 0
  %1350 = vmatprep.subr.bf16.mxu0 0
  %1351 = vmatpush1.bf16.msra.mxu0 0
  %1352 = vmatprep.subr.bf16.mxu0 0
  %1353 = vmatpush1.bf16.msra.mxu0 0
  %1354 = vmatprep.subr.bf16.mxu0 0
  %1355 = vmatpush1.bf16.msra.mxu0 0
  %1356 = vmatprep.subr.bf16.mxu0 0
  %1357 = vmatpush1.bf16.msra.mxu0 0
  %1358 = vmatprep.subr.bf16.mxu0 0
  %1359 = vmatpush1.bf16.msra.mxu0 0
  %1360 = vmatprep.subr.bf16.mxu0 0
  %1361 = vmatpush1.bf16.msra.mxu0 0
  %1362 = vmatprep.subr.bf16.mxu0 0
  %1363 = vmatpush1.bf16.msra.mxu0 0
  %1364 = vmatprep.subr.bf16.mxu0 0
  %1365 = vmatpush1.bf16.msra.mxu0 0
  %1366 = vmatprep.mubr.bf16.mxu0 0
  %1367 = vmatmul.mubr.bf16.gmra.mrb[0].mxu0 %v1332
  %v1368 = vpop.f32.mrb[0].mxu0
  %v1369 = vadd.f32 0.0, %v1368
  %v1370 = vpop.f32.mrb[0].mxu0
  %v1371 = vadd.f32 0.0, %v1370
  %v1372 = vpop.f32.mrb[0].mxu0
  %v1373 = vpop.f32.mrb[0].mxu0
  %1374 = vdwg.mxu0
  %1375 = vmatprep.subr.bf16.mxu0 %v563
  %1376 = vmatpush1.bf16.msra.mxu0 %v562
  %1377 = vmatprep.subr.bf16.mxu0 %v567
  %1378 = vmatpush1.bf16.msra.mxu0 %v566
  %1379 = vmatprep.subr.bf16.mxu0 %v571
  %1380 = vmatpush1.bf16.msra.mxu0 %v570
  %1381 = vmatprep.subr.bf16.mxu0 %v575
  %1382 = vmatpush1.bf16.msra.mxu0 %v574
  %1383 = vmatprep.subr.bf16.mxu0 0
  %1384 = vmatpush1.bf16.msra.mxu0 0
  %1385 = vmatprep.subr.bf16.mxu0 0
  %1386 = vmatpush1.bf16.msra.mxu0 0
  %1387 = vmatprep.subr.bf16.mxu0 0
  %1388 = vmatpush1.bf16.msra.mxu0 0
  %1389 = vmatprep.subr.bf16.mxu0 0
  %1390 = vmatpush1.bf16.msra.mxu0 0
  %1391 = vmatprep.subr.bf16.mxu0 0
  %1392 = vmatpush1.bf16.msra.mxu0 0
  %1393 = vmatprep.subr.bf16.mxu0 0
  %1394 = vmatpush1.bf16.msra.mxu0 0
  %1395 = vmatprep.subr.bf16.mxu0 0
  %1396 = vmatpush1.bf16.msra.mxu0 0
  %1397 = vmatprep.subr.bf16.mxu0 0
  %1398 = vmatpush1.bf16.msra.mxu0 0
  %1399 = vmatprep.subr.bf16.mxu0 0
  %1400 = vmatpush1.bf16.msra.mxu0 0
  %1401 = vmatprep.subr.bf16.mxu0 0
  %1402 = vmatpush1.bf16.msra.mxu0 0
  %1403 = vmatprep.subr.bf16.mxu0 0
  %1404 = vmatpush1.bf16.msra.mxu0 0
  %1405 = vmatprep.subr.bf16.mxu0 0
  %1406 = vmatpush1.bf16.msra.mxu0 0
  %1407 = vmatprep.mubr.bf16.mxu0 0
  %1408 = vmatmul.mubr.bf16.gmra.mrb[0].mxu0 %v1332
  %v1409 = vpop.f32.mrb[0].mxu0
  %v1410 = vadd.f32 0.0, %v1409
  %v1411 = vpop.f32.mrb[0].mxu0
  %v1412 = vadd.f32 0.0, %v1411
  %v1413 = vpop.f32.mrb[0].mxu0
  %v1414 = vpop.f32.mrb[0].mxu0
  %1415 = vdwg.mxu0
  %v1416 = vadd.f32 %v1326, %v1369
  %v1417 = vadd.f32 %v1327, %v1371
  %v1418 = vadd.f32 %v1328, %v1410
  %v1419 = vadd.f32 %v1329, %v1412
  %v1420 = vmul.f32 %v1416, 0.5
  %v1421 = vtanh.pop %v1420
  %v1422 = vmul.f32 %v1421, 0.5
  %v1423 = vadd.f32 %v1422, 0.5
  %v1424 = vmul.f32 %v1417, 0.5
  %v1425 = vtanh.pop %v1424
  %v1426 = vmul.f32 %v1425, 0.5
  %v1427 = vadd.f32 %v1426, 0.5
  %v1428 = vtanh.pop %v1418
  %v1429 = vmul.f32 %v1419, 0.5
  %v1430 = vtanh.pop %v1429
  %v1431 = vmul.f32 %v1430, 0.5
  %v1432 = vadd.f32 %v1431, 0.5
  %v1433 = vmul.f32 %v1427, %v1322
  %v1434 = vmul.f32 %v1423, %v1428
  %v1435 = vadd.f32 %v1433, %v1434
  %v1436 = vtanh.pop %v1435
  %v1437 = vmul.f32 %v1432, %v1436
  %vm1438 = vcmp.gt.s32.totalorder %v488, 6
  %v1439 = vsel %vm1438, 1, 0
  %1440 = vset.pattern.permute.xlu0 0
  %1441 = vperm.xlu0 %1440, %v1439
  %v1442 = vpop.permute.xlu0 %1441
  %vm1443 = vcmp.eq.s32.totalorder %v1442, 1
  %v1444 = vsel %vm1443, %v1437, %v1321
  %v1445 = vsel %vm1443, %v1435, %v1322
  %s1446 = smul.u32 7, 4
  %s1447 = smul.addr %s1446, 8
  %s1448 = scalar_lea.vmem [#allocation2], %s1447
  %v1449 = vld [vmem:[%s1448] sm:$0xff]
  %v1450 = vld [vmem:[%s1448 + $0x8] sm:$0xff]
  %v1451 = vld [vmem:[%s1448 + $0x10] sm:$0xff]
  %v1452 = vld [vmem:[%s1448 + $0x18] sm:$0xff]
  %v1453 = vpack.c.bf16 %v1444, %v1444
  %v1455 = vsel %vm592, %v1453, 0
  %1457 = vmatprep.subr.bf16.mxu0 %v561
  %1458 = vmatpush1.bf16.msra.mxu0 %v560
  %1459 = vmatprep.subr.bf16.mxu0 %v565
  %1460 = vmatpush1.bf16.msra.mxu0 %v564
  %1461 = vmatprep.subr.bf16.mxu0 %v569
  %1462 = vmatpush1.bf16.msra.mxu0 %v568
  %1463 = vmatprep.subr.bf16.mxu0 %v573
  %1464 = vmatpush1.bf16.msra.mxu0 %v572
  %1465 = vmatprep.subr.bf16.mxu0 0
  %1466 = vmatpush1.bf16.msra.mxu0 0
  %1467 = vmatprep.subr.bf16.mxu0 0
  %1468 = vmatpush1.bf16.msra.mxu0 0
  %1469 = vmatprep.subr.bf16.mxu0 0
  %1470 = vmatpush1.bf16.msra.mxu0 0
  %1471 = vmatprep.subr.bf16.mxu0 0
  %1472 = vmatpush1.bf16.msra.mxu0 0
  %1473 = vmatprep.subr.bf16.mxu0 0
  %1474 = vmatpush1.bf16.msra.mxu0 0
  %1475 = vmatprep.subr.bf16.mxu0 0
  %1476 = vmatpush1.bf16.msra.mxu0 0
  %1477 = vmatprep.subr.bf16.mxu0 0
  %1478 = vmatpush1.bf16.msra.mxu0 0
  %1479 = vmatprep.subr.bf16.mxu0 0
  %1480 = vmatpush1.bf16.msra.mxu0 0
  %1481 = vmatprep.subr.bf16.mxu0 0
  %1482 = vmatpush1.bf16.msra.mxu0 0
  %1483 = vmatprep.subr.bf16.mxu0 0
  %1484 = vmatpush1.bf16.msra.mxu0 0
  %1485 = vmatprep.subr.bf16.mxu0 0
  %1486 = vmatpush1.bf16.msra.mxu0 0
  %1487 = vmatprep.subr.bf16.mxu0 0
  %1488 = vmatpush1.bf16.msra.mxu0 0
  %1489 = vmatprep.mubr.bf16.mxu0 0
  %1490 = vmatmul.mubr.bf16.gmra.mrb[0].mxu0 %v1455
  %v1491 = vpop.f32.mrb[0].mxu0
  %v1492 = vadd.f32 0.0, %v1491
  %v1493 = vpop.f32.mrb[0].mxu0
  %v1494 = vadd.f32 0.0, %v1493
  %v1495 = vpop.f32.mrb[0].mxu0
  %v1496 = vpop.f32.mrb[0].mxu0
  %1497 = vdwg.mxu0
  %1498 = vmatprep.subr.bf16.mxu0 %v563
  %1499 = vmatpush1.bf16.msra.mxu0 %v562
  %1500 = vmatprep.subr.bf16.mxu0 %v567
  %1501 = vmatpush1.bf16.msra.mxu0 %v566
  %1502 = vmatprep.subr.bf16.mxu0 %v571
  %1503 = vmatpush1.bf16.msra.mxu0 %v570
  %1504 = vmatprep.subr.bf16.mxu0 %v575
  %1505 = vmatpush1.bf16.msra.mxu0 %v574
  %1506 = vmatprep.subr.bf16.mxu0 0
  %1507 = vmatpush1.bf16.msra.mxu0 0
  %1508 = vmatprep.subr.bf16.mxu0 0
  %1509 = vmatpush1.bf16.msra.mxu0 0
  %1510 = vmatprep.subr.bf16.mxu0 0
  %1511 = vmatpush1.bf16.msra.mxu0 0
  %1512 = vmatprep.subr.bf16.mxu0 0
  %1513 = vmatpush1.bf16.msra.mxu0 0
  %1514 = vmatprep.subr.bf16.mxu0 0
  %1515 = vmatpush1.bf16.msra.mxu0 0
  %1516 = vmatprep.subr.bf16.mxu0 0
  %1517 = vmatpush1.bf16.msra.mxu0 0
  %1518 = vmatprep.subr.bf16.mxu0 0
  %1519 = vmatpush1.bf16.msra.mxu0 0
  %1520 = vmatprep.subr.bf16.mxu0 0
  %1521 = vmatpush1.bf16.msra.mxu0 0
  %1522 = vmatprep.subr.bf16.mxu0 0
  %1523 = vmatpush1.bf16.msra.mxu0 0
  %1524 = vmatprep.subr.bf16.mxu0 0
  %1525 = vmatpush1.bf16.msra.mxu0 0
  %1526 = vmatprep.subr.bf16.mxu0 0
  %1527 = vmatpush1.bf16.msra.mxu0 0
  %1528 = vmatprep.subr.bf16.mxu0 0
  %1529 = vmatpush1.bf16.msra.mxu0 0
  %1530 = vmatprep.mubr.bf16.mxu0 0
  %1531 = vmatmul.mubr.bf16.gmra.mrb[0].mxu0 %v1455
  %v1532 = vpop.f32.mrb[0].mxu0
  %v1533 = vadd.f32 0.0, %v1532
  %v1534 = vpop.f32.mrb[0].mxu0
  %v1535 = vadd.f32 0.0, %v1534
  %v1536 = vpop.f32.mrb[0].mxu0
  %v1537 = vpop.f32.mrb[0].mxu0
  %1538 = vdwg.mxu0
  %v1539 = vadd.f32 %v1449, %v1492
  %v1540 = vadd.f32 %v1450, %v1494
  %v1541 = vadd.f32 %v1451, %v1533
  %v1542 = vadd.f32 %v1452, %v1535
  %v1543 = vmul.f32 %v1539, 0.5
  %v1544 = vtanh.pop %v1543
  %v1545 = vmul.f32 %v1544, 0.5
  %v1546 = vadd.f32 %v1545, 0.5
  %v1547 = vmul.f32 %v1540, 0.5
  %v1548 = vtanh.pop %v1547
  %v1549 = vmul.f32 %v1548, 0.5
  %v1550 = vadd.f32 %v1549, 0.5
  %v1551 = vtanh.pop %v1541
  %v1552 = vmul.f32 %v1542, 0.5
  %v1553 = vtanh.pop %v1552
  %v1554 = vmul.f32 %v1553, 0.5
  %v1555 = vadd.f32 %v1554, 0.5
  %v1556 = vmul.f32 %v1550, %v1445
  %v1557 = vmul.f32 %v1546, %v1551
  %v1558 = vadd.f32 %v1556, %v1557
  %v1559 = vtanh.pop %v1558
  %v1560 = vmul.f32 %v1555, %v1559
  %vm1561 = vcmp.gt.s32.totalorder %v488, 7
  %v1562 = vsel %vm1561, 1, 0
  %1563 = vset.pattern.permute.xlu0 0
  %1564 = vperm.xlu0 %1563, %v1562
  %v1565 = vpop.permute.xlu0 %1564
  %vm1566 = vcmp.eq.s32.totalorder %v1565, 1
  %v1567 = vsel %vm1566, %v1560, %v1444
  %v1568 = vld [vmem:[%s1] sm:$0xff]
  %1569 = vset.pattern.permute.xlu0 0
  %1570 = vperm.xlu0 %1569, %v1568
  %v1571 = vpop.permute.xlu0 %1570
  %vm1572 = vcmp.eq.s32.totalorder %v1571, %v51
  %v1573 = vsel %vm1572, 1.0, 0.0
  %v1574 = vpack.c.bf16 %v1573, %v1573
  %v1575 = vld [vmem:[%s7] sm:$0xff]
  %v1576 = vld [vmem:[%s7 + $0x8] sm:$0xff]
  %v1577 = vld [vmem:[%s7 + $0x10] sm:$0xff]
  %v1578 = vld [vmem:[%s7 + $0x18] sm:$0xff]
  %v1579 = vld [vmem:[%s7 + $0x20] sm:$0xff]
  %v1580 = vld [vmem:[%s7 + $0x28] sm:$0xff]
  %v1581 = vld [vmem:[%s7 + $0x30] sm:$0xff]
  %v1582 = vld [vmem:[%s7 + $0x38] sm:$0xff]
  %v1583 = vld [vmem:[%s7 + $0x40] sm:$0xff]
  %v1584 = vld [vmem:[%s7 + $0x48] sm:$0xff]
  %v1585 = vld [vmem:[%s7 + $0x50] sm:$0xff]
  %v1586 = vld [vmem:[%s7 + $0x58] sm:$0xff]
  %v1587 = vld [vmem:[%s7 + $0x60] sm:$0xff]
  %v1588 = vld [vmem:[%s7 + $0x68] sm:$0xff]
  %v1589 = vld [vmem:[%s7 + $0x70] sm:$0xff]
  %v1590 = vld [vmem:[%s7 + $0x78] sm:$0xff]
  %v1591 = vld [vmem:[%s7 + $0x80] sm:$0xff]
  %v1592 = vld [vmem:[%s7 + $0x88] sm:$0xff]
  %v1593 = vld [vmem:[%s7 + $0x90] sm:$0xff]
  %v1594 = vld [vmem:[%s7 + $0x98] sm:$0xff]
  %v1595 = vld [vmem:[%s7 + $0xa0] sm:$0xff]
  %v1596 = vld [vmem:[%s7 + $0xa8] sm:$0xff]
  %v1597 = vld [vmem:[%s7 + $0xb0] sm:$0xff]
  %v1598 = vld [vmem:[%s7 + $0xb8] sm:$0xff]
  %v1599 = vld [vmem:[%s7 + $0xc0] sm:$0xff]
  %v1600 = vld [vmem:[%s7 + $0xc8] sm:$0xff]
  %v1601 = vld [vmem:[%s7 + $0xd0] sm:$0xff]
  %v1602 = vld [vmem:[%s7 + $0xd8] sm:$0xff]
  %v1603 = vld [vmem:[%s7 + $0xe0] sm:$0xff]
  %v1604 = vld [vmem:[%s7 + $0xe8] sm:$0xff]
  %v1605 = vld [vmem:[%s7 + $0xf0] sm:$0xff]
  %v1606 = vld [vmem:[%s7 + $0xf8] sm:$0xff]
  %v1607 = vld [vmem:[%s8] sm:$0xf]
  %v1609 = vlaneseq
  %v1610 = vshrl.u32 %v1609, 7
  %v1611 = vsub.s32 0, %v1610
  %v1612 = vrot.slane %v1607, %v1611
  %v1613 = vlaneseq
  %v1614 = vshrl.u32 %v1613, 7
  %v1615 = vsub.s32 2, %v1614
  %v1616 = vrot.slane %v1607, %v1615
  %v1617 = vlaneseq
  %v1618 = vshrl.u32 %v1617, 7
  %v1619 = vsub.s32 3, %v1618
  %v1620 = vrot.slane %v1607, %v1619
  %v1656 = vunpack.c.l.b16 %v1575
  %v1657 = vunpack.c.h.b16 %v1575
  %v1658 = vunpack.c.l.b16 %v1576
  %v1659 = vunpack.c.h.b16 %v1576
  %v1660 = vunpack.c.l.b16 %v1577
  %v1661 = vunpack.c.h.b16 %v1577
  %v1662 = vunpack.c.l.b16 %v1578
  %v1663 = vunpack.c.h.b16 %v1578
  %v1664 = vunpack.c.l.b16 %v1579
  %v1665 = vunpack.c.h.b16 %v1579
  %v1666 = vunpack.c.l.b16 %v1580
  %v1667 = vunpack.c.h.b16 %v1580
  %v1668 = vunpack.c.l.b16 %v1581
  %v1669 = vunpack.c.h.b16 %v1581
  %v1670 = vunpack.c.l.b16 %v1582
  %v1671 = vunpack.c.h.b16 %v1582
  %v1672 = vunpack.c.l.b16 %v1583
  %v1673 = vunpack.c.h.b16 %v1583
  %v1674 = vunpack.c.l.b16 %v1584
  %v1675 = vunpack.c.h.b16 %v1584
  %v1676 = vunpack.c.l.b16 %v1585
  %v1677 = vunpack.c.h.b16 %v1585
  %v1678 = vunpack.c.l.b16 %v1586
  %v1679 = vunpack.c.h.b16 %v1586
  %v1680 = vunpack.c.l.b16 %v1587
  %v1681 = vunpack.c.h.b16 %v1587
  %v1682 = vunpack.c.l.b16 %v1588
  %v1683 = vunpack.c.h.b16 %v1588
  %v1684 = vunpack.c.l.b16 %v1589
  %v1685 = vunpack.c.h.b16 %v1589
  %v1686 = vunpack.c.l.b16 %v1590
  %v1687 = vunpack.c.h.b16 %v1590
  %v1688 = vunpack.c.l.b16 %v1591
  %v1689 = vunpack.c.h.b16 %v1591
  %v1690 = vunpack.c.l.b16 %v1592
  %v1691 = vunpack.c.h.b16 %v1592
  %v1692 = vunpack.c.l.b16 %v1593
  %v1693 = vunpack.c.h.b16 %v1593
  %v1694 = vunpack.c.l.b16 %v1594
  %v1695 = vunpack.c.h.b16 %v1594
  %v1696 = vunpack.c.l.b16 %v1595
  %v1697 = vunpack.c.h.b16 %v1595
  %v1698 = vunpack.c.l.b16 %v1596
  %v1699 = vunpack.c.h.b16 %v1596
  %v1700 = vunpack.c.l.b16 %v1597
  %v1701 = vunpack.c.h.b16 %v1597
  %v1702 = vunpack.c.l.b16 %v1598
  %v1703 = vunpack.c.h.b16 %v1598
  %v1704 = vunpack.c.l.b16 %v1599
  %v1705 = vunpack.c.h.b16 %v1599
  %v1706 = vunpack.c.l.b16 %v1600
  %v1707 = vunpack.c.h.b16 %v1600
  %v1708 = vunpack.c.l.b16 %v1601
  %v1709 = vunpack.c.h.b16 %v1601
  %v1710 = vunpack.c.l.b16 %v1602
  %v1711 = vunpack.c.h.b16 %v1602
  %v1712 = vunpack.c.l.b16 %v1603
  %v1713 = vunpack.c.h.b16 %v1603
  %v1714 = vunpack.c.l.b16 %v1604
  %v1715 = vunpack.c.h.b16 %v1604
  %v1716 = vunpack.c.l.b16 %v1605
  %v1717 = vunpack.c.h.b16 %v1605
  %v1718 = vunpack.c.l.b16 %v1606
  %v1719 = vunpack.c.h.b16 %v1606
  %v1720 = vpack.c.b16 %v1660, %v1656
  %v1721 = vpack.c.b16 %v1661, %v1657
  %v1722 = vpack.c.b16 %v1662, %v1658
  %v1723 = vpack.c.b16 %v1663, %v1659
  %v1724 = vpack.c.b16 %v1668, %v1664
  %v1725 = vpack.c.b16 %v1669, %v1665
  %v1726 = vpack.c.b16 %v1670, %v1666
  %v1727 = vpack.c.b16 %v1671, %v1667
  %v1728 = vpack.c.b16 %v1676, %v1672
  %v1729 = vpack.c.b16 %v1677, %v1673
  %v1730 = vpack.c.b16 %v1678, %v1674
  %v1731 = vpack.c.b16 %v1679, %v1675
  %v1732 = vpack.c.b16 %v1684, %v1680
  %v1733 = vpack.c.b16 %v1685, %v1681
  %v1734 = vpack.c.b16 %v1686, %v1682
  %v1735 = vpack.c.b16 %v1687, %v1683
  %v1736 = vpack.c.b16 %v1692, %v1688
  %v1737 = vpack.c.b16 %v1693, %v1689
  %v1738 = vpack.c.b16 %v1694, %v1690
  %v1739 = vpack.c.b16 %v1695, %v1691
  %v1740 = vpack.c.b16 %v1700, %v1696
  %v1741 = vpack.c.b16 %v1701, %v1697
  %v1742 = vpack.c.b16 %v1702, %v1698
  %v1743 = vpack.c.b16 %v1703, %v1699
  %v1744 = vpack.c.b16 %v1708, %v1704
  %v1745 = vpack.c.b16 %v1709, %v1705
  %v1746 = vpack.c.b16 %v1710, %v1706
  %v1747 = vpack.c.b16 %v1711, %v1707
  %v1748 = vpack.c.b16 %v1716, %v1712
  %v1749 = vpack.c.b16 %v1717, %v1713
  %v1750 = vpack.c.b16 %v1718, %v1714
  %v1751 = vpack.c.b16 %v1719, %v1715
  %1784 = vmatprep.subr.bf16.mxu0 %v1721
  %1785 = vmatpush1.bf16.msra.mxu0 %v1720
  %1786 = vmatprep.subr.bf16.mxu0 %v1725
  %1787 = vmatpush1.bf16.msra.mxu0 %v1724
  %1788 = vmatprep.subr.bf16.mxu0 %v1729
  %1789 = vmatpush1.bf16.msra.mxu0 %v1728
  %1790 = vmatprep.subr.bf16.mxu0 %v1733
  %1791 = vmatpush1.bf16.msra.mxu0 %v1732
  %1792 = vmatprep.subr.bf16.mxu0 %v1737
  %1793 = vmatpush1.bf16.msra.mxu0 %v1736
  %1794 = vmatprep.subr.bf16.mxu0 %v1741
  %1795 = vmatpush1.bf16.msra.mxu0 %v1740
  %1796 = vmatprep.subr.bf16.mxu0 %v1745
  %1797 = vmatpush1.bf16.msra.mxu0 %v1744
  %1798 = vmatprep.subr.bf16.mxu0 %v1749
  %1799 = vmatpush1.bf16.msra.mxu0 %v1748
  %1800 = vmatprep.subr.bf16.mxu0 0
  %1801 = vmatpush1.bf16.msra.mxu0 0
  %1802 = vmatprep.subr.bf16.mxu0 0
  %1803 = vmatpush1.bf16.msra.mxu0 0
  %1804 = vmatprep.subr.bf16.mxu0 0
  %1805 = vmatpush1.bf16.msra.mxu0 0
  %1806 = vmatprep.subr.bf16.mxu0 0
  %1807 = vmatpush1.bf16.msra.mxu0 0
  %1808 = vmatprep.subr.bf16.mxu0 0
  %1809 = vmatpush1.bf16.msra.mxu0 0
  %1810 = vmatprep.subr.bf16.mxu0 0
  %1811 = vmatpush1.bf16.msra.mxu0 0
  %1812 = vmatprep.subr.bf16.mxu0 0
  %1813 = vmatpush1.bf16.msra.mxu0 0
  %1814 = vmatprep.subr.bf16.mxu0 0
  %1815 = vmatpush1.bf16.msra.mxu0 0
  %1816 = vmatprep.mubr.bf16.mxu0 0
  %1817 = vmatmul.mubr.bf16.gmra.mrb[0].mxu0 %v1574
  %v1818 = vpop.f32.mrb[0].mxu0
  %v1819 = vadd.f32 %v1612, %v1818
  %v1820 = vpop.f32.mrb[0].mxu0
  %v1821 = vpop.f32.mrb[0].mxu0
  %v1822 = vpop.f32.mrb[0].mxu0
  %1823 = vdwg.mxu0
  %1824 = vmatprep.subr.bf16.mxu0 %v1723
  %1825 = vmatpush1.bf16.msra.mxu0 %v1722
  %1826 = vmatprep.subr.bf16.mxu0 %v1727
  %1827 = vmatpush1.bf16.msra.mxu0 %v1726
  %1828 = vmatprep.subr.bf16.mxu0 %v1731
  %1829 = vmatpush1.bf16.msra.mxu0 %v1730
  %1830 = vmatprep.subr.bf16.mxu0 %v1735
  %1831 = vmatpush1.bf16.msra.mxu0 %v1734
  %1832 = vmatprep.subr.bf16.mxu0 %v1739
  %1833 = vmatpush1.bf16.msra.mxu0 %v1738
  %1834 = vmatprep.subr.bf16.mxu0 %v1743
  %1835 = vmatpush1.bf16.msra.mxu0 %v1742
  %1836 = vmatprep.subr.bf16.mxu0 %v1747
  %1837 = vmatpush1.bf16.msra.mxu0 %v1746
  %1838 = vmatprep.subr.bf16.mxu0 %v1751
  %1839 = vmatpush1.bf16.msra.mxu0 %v1750
  %1840 = vmatprep.subr.bf16.mxu0 0
  %1841 = vmatpush1.bf16.msra.mxu0 0
  %1842 = vmatprep.subr.bf16.mxu0 0
  %1843 = vmatpush1.bf16.msra.mxu0 0
  %1844 = vmatprep.subr.bf16.mxu0 0
  %1845 = vmatpush1.bf16.msra.mxu0 0
  %1846 = vmatprep.subr.bf16.mxu0 0
  %1847 = vmatpush1.bf16.msra.mxu0 0
  %1848 = vmatprep.subr.bf16.mxu0 0
  %1849 = vmatpush1.bf16.msra.mxu0 0
  %1850 = vmatprep.subr.bf16.mxu0 0
  %1851 = vmatpush1.bf16.msra.mxu0 0
  %1852 = vmatprep.subr.bf16.mxu0 0
  %1853 = vmatpush1.bf16.msra.mxu0 0
  %1854 = vmatprep.subr.bf16.mxu0 0
  %1855 = vmatpush1.bf16.msra.mxu0 0
  %1856 = vmatprep.mubr.bf16.mxu0 0
  %1857 = vmatmul.mubr.bf16.gmra.mrb[0].mxu0 %v1574
  %v1858 = vpop.f32.mrb[0].mxu0
  %v1859 = vadd.f32 %v1616, %v1858
  %v1860 = vpop.f32.mrb[0].mxu0
  %v1861 = vadd.f32 %v1620, %v1860
  %v1862 = vpop.f32.mrb[0].mxu0
  %v1863 = vpop.f32.mrb[0].mxu0
  %1864 = vdwg.mxu0
  %v1865 = vmul.f32 %v1819, 0.5
  %v1866 = vtanh.pop %v1865
  %v1867 = vmul.f32 %v1866, 0.5
  %v1868 = vadd.f32 %v1867, 0.5
  %v1869 = vtanh.pop %v1859
  %v1870 = vmul.f32 %v1861, 0.5
  %v1871 = vtanh.pop %v1870
  %v1872 = vmul.f32 %v1871, 0.5
  %v1873 = vadd.f32 %v1872, 0.5
  %v1874 = vmul.f32 %v1868, %v1869
  %v1875 = vtanh.pop %v1874
  %v1876 = vmul.f32 %v1873, %v1875
  %v1877 = vld [vmem:[%s3] sm:$0xff]
  %1879 = vset.pattern.permute.xlu0 0
  %1880 = vperm.xlu0 %1879, %v1877
  %v1881 = vpop.permute.xlu0 %1880
  %v1883 = vmul.f32 %v1567, %v1881
  %v1884 = vld [vmem:[%s9] sm:$0xff]
  %v1885 = vld [vmem:[%s9 + $0x8] sm:$0xff]
  %v1886 = vld [vmem:[%s9 + $0x10] sm:$0xff]
  %v1887 = vld [vmem:[%s9 + $0x18] sm:$0xff]
  %v1888 = vld [vmem:[%s9 + $0x20] sm:$0xff]
  %v1889 = vld [vmem:[%s9 + $0x28] sm:$0xff]
  %v1890 = vld [vmem:[%s9 + $0x30] sm:$0xff]
  %v1891 = vld [vmem:[%s9 + $0x38] sm:$0xff]
  %v1892 = vmul.f32 %v1876, %v1881
  %v1893 = vld [vmem:[%s10] sm:$0xff]
  %v1894 = vld [vmem:[%s10 + $0x8] sm:$0xff]
  %v1895 = vld [vmem:[%s10 + $0x10] sm:$0xff]
  %v1896 = vld [vmem:[%s10 + $0x18] sm:$0xff]
  %v1897 = vld [vmem:[%s10 + $0x20] sm:$0xff]
  %v1898 = vld [vmem:[%s10 + $0x28] sm:$0xff]
  %v1899 = vld [vmem:[%s10 + $0x30] sm:$0xff]
  %v1900 = vld [vmem:[%s10 + $0x38] sm:$0xff]
  %v1902 = vsel %vm592, %v1892, 0
  %1904 = vmatprep.subr.mxu0 0.0
  %1905 = vmatpush1.msra.mxu0 %v1893
  %1906 = vmatprep.subr.mxu0 0.0
  %1907 = vmatpush1.msra.mxu0 %v1894
  %1908 = vmatprep.subr.mxu0 0.0
  %1909 = vmatpush1.msra.mxu0 %v1895
  %1910 = vmatprep.subr.mxu0 0.0
  %1911 = vmatpush1.msra.mxu0 %v1896
  %1912 = vmatprep.subr.mxu0 0.0
  %1913 = vmatpush1.msra.mxu0 %v1897
  %1914 = vmatprep.subr.mxu0 0.0
  %1915 = vmatpush1.msra.mxu0 %v1898
  %1916 = vmatprep.subr.mxu0 0.0
  %1917 = vmatpush1.msra.mxu0 %v1899
  %1918 = vmatprep.subr.mxu0 0.0
  %1919 = vmatpush1.msra.mxu0 %v1900
  %1920 = vmatprep.subr.mxu0 0.0
  %1921 = vmatpush1.msra.mxu0 0.0
  %1922 = vmatprep.subr.mxu0 0.0
  %1923 = vmatpush1.msra.mxu0 0.0
  %1924 = vmatprep.subr.mxu0 0.0
  %1925 = vmatpush1.msra.mxu0 0.0
  %1926 = vmatprep.subr.mxu0 0.0
  %1927 = vmatpush1.msra.mxu0 0.0
  %1928 = vmatprep.subr.mxu0 0.0
  %1929 = vmatpush1.msra.mxu0 0.0
  %1930 = vmatprep.subr.mxu0 0.0
  %1931 = vmatpush1.msra.mxu0 0.0
  %1932 = vmatprep.subr.mxu0 0.0
  %1933 = vmatpush1.msra.mxu0 0.0
  %1934 = vmatprep.subr.mxu0 0.0
  %1935 = vmatpush1.msra.mxu0 0.0
  %1936 = vmatprep.subr.mxu0 0.0
  %1937 = vmatpush1.msra.mxu0 0.0
  %1938 = vmatprep.subr.mxu0 0.0
  %1939 = vmatpush1.msra.mxu0 0.0
  %1940 = vmatprep.subr.mxu0 0.0
  %1941 = vmatpush1.msra.mxu0 0.0
  %1942 = vmatprep.subr.mxu0 0.0
  %1943 = vmatpush1.msra.mxu0 0.0
  %1944 = vmatprep.subr.mxu0 0.0
  %1945 = vmatpush1.msra.mxu0 0.0
  %1946 = vmatprep.subr.mxu0 0.0
  %1947 = vmatpush1.msra.mxu0 0.0
  %1948 = vmatprep.subr.mxu0 0.0
  %1949 = vmatpush1.msra.mxu0 0.0
  %1950 = vmatprep.subr.mxu0 0.0
  %1951 = vmatpush1.msra.mxu0 0.0
  %1952 = vmatprep.subr.mxu0 0.0
  %1953 = vmatpush1.msra.mxu0 0.0
  %1954 = vmatprep.subr.mxu0 0.0
  %1955 = vmatpush1.msra.mxu0 0.0
  %1956 = vmatprep.subr.mxu0 0.0
  %1957 = vmatpush1.msra.mxu0 0.0
  %1958 = vmatprep.subr.mxu0 0.0
  %1959 = vmatpush1.msra.mxu0 0.0
  %1960 = vmatprep.subr.mxu0 0.0
  %1961 = vmatpush1.msra.mxu0 0.0
  %1962 = vmatprep.subr.mxu0 0.0
  %1963 = vmatpush1.msra.mxu0 0.0
  %1964 = vmatprep.subr.mxu0 0.0
  %1965 = vmatpush1.msra.mxu0 0.0
  %1966 = vmatprep.subr.mxu0 0.0
  %1967 = vmatpush1.msra.mxu0 0.0
  %1968 = vmatprep.mubr.f32.mxu0 0.0
  %1969 = vmatmul.mubr.f32.gmra.mrb[0].mxu0 %v1902
  %v1970 = vpop.f32.mrb[0].mxu0
  %v1971 = vadd.f32 0.0, %v1970
  %v1972 = vpop.f32.mrb[0].mxu0
  %1973 = vdwg.mxu0
  %v1975 = vsel %vm592, %v1883, 0
  %1977 = vmatprep.subr.mxu0 0.0
  %1978 = vmatpush1.msra.mxu0 %v1884
  %1979 = vmatprep.subr.mxu0 0.0
  %1980 = vmatpush1.msra.mxu0 %v1885
  %1981 = vmatprep.subr.mxu0 0.0
  %1982 = vmatpush1.msra.mxu0 %v1886
  %1983 = vmatprep.subr.mxu0 0.0
  %1984 = vmatpush1.msra.mxu0 %v1887
  %1985 = vmatprep.subr.mxu0 0.0
  %1986 = vmatpush1.msra.mxu0 %v1888
  %1987 = vmatprep.subr.mxu0 0.0
  %1988 = vmatpush1.msra.mxu0 %v1889
  %1989 = vmatprep.subr.mxu0 0.0
  %1990 = vmatpush1.msra.mxu0 %v1890
  %1991 = vmatprep.subr.mxu0 0.0
  %1992 = vmatpush1.msra.mxu0 %v1891
  %1993 = vmatprep.subr.mxu0 0.0
  %1994 = vmatpush1.msra.mxu0 0.0
  %1995 = vmatprep.subr.mxu0 0.0
  %1996 = vmatpush1.msra.mxu0 0.0
  %1997 = vmatprep.subr.mxu0 0.0
  %1998 = vmatpush1.msra.mxu0 0.0
  %1999 = vmatprep.subr.mxu0 0.0
  %2000 = vmatpush1.msra.mxu0 0.0
  %2001 = vmatprep.subr.mxu0 0.0
  %2002 = vmatpush1.msra.mxu0 0.0
  %2003 = vmatprep.subr.mxu0 0.0
  %2004 = vmatpush1.msra.mxu0 0.0
  %2005 = vmatprep.subr.mxu0 0.0
  %2006 = vmatpush1.msra.mxu0 0.0
  %2007 = vmatprep.subr.mxu0 0.0
  %2008 = vmatpush1.msra.mxu0 0.0
  %2009 = vmatprep.subr.mxu0 0.0
  %2010 = vmatpush1.msra.mxu0 0.0
  %2011 = vmatprep.subr.mxu0 0.0
  %2012 = vmatpush1.msra.mxu0 0.0
  %2013 = vmatprep.subr.mxu0 0.0
  %2014 = vmatpush1.msra.mxu0 0.0
  %2015 = vmatprep.subr.mxu0 0.0
  %2016 = vmatpush1.msra.mxu0 0.0
  %2017 = vmatprep.subr.mxu0 0.0
  %2018 = vmatpush1.msra.mxu0 0.0
  %2019 = vmatprep.subr.mxu0 0.0
  %2020 = vmatpush1.msra.mxu0 0.0
  %2021 = vmatprep.subr.mxu0 0.0
  %2022 = vmatpush1.msra.mxu0 0.0
  %2023 = vmatprep.subr.mxu0 0.0
  %2024 = vmatpush1.msra.mxu0 0.0
  %2025 = vmatprep.subr.mxu0 0.0
  %2026 = vmatpush1.msra.mxu0 0.0
  %2027 = vmatprep.subr.mxu0 0.0
  %2028 = vmatpush1.msra.mxu0 0.0
  %2029 = vmatprep.subr.mxu0 0.0
  %2030 = vmatpush1.msra.mxu0 0.0
  %2031 = vmatprep.subr.mxu0 0.0
  %2032 = vmatpush1.msra.mxu0 0.0
  %2033 = vmatprep.subr.mxu0 0.0
  %2034 = vmatpush1.msra.mxu0 0.0
  %2035 = vmatprep.subr.mxu0 0.0
  %2036 = vmatpush1.msra.mxu0 0.0
  %2037 = vmatprep.subr.mxu0 0.0
  %2038 = vmatpush1.msra.mxu0 0.0
  %2039 = vmatprep.subr.mxu0 0.0
  %2040 = vmatpush1.msra.mxu0 0.0
  %2041 = vmatprep.mubr.f32.mxu0 0.0
  %2042 = vmatmul.mubr.f32.gmra.mrb[0].mxu0 %v1975
  %v2043 = vpop.f32.mrb[0].mxu0
  %v2044 = vadd.f32 %v1971, %v2043
  %v2045 = vpop.f32.mrb[0].mxu0
  %2046 = vdwg.mxu0
  %v2047 = vld [vmem:[%s11] sm:$0x1]
  %v2049 = vlaneseq
  %v2050 = vshrl.u32 %v2049, 7
  %v2051 = vsub.s32 0, %v2050
  %v2052 = vrot.slane %v2047, %v2051
  %v2054 = vadd.f32 %v2044, %v2052
  %2055 = vst [vmem:[%s12] sm:$0xff] %v2054
  // Predicated region
  $region50: #{smiles_net_forward.1} parent=0 // pred_check
    _
  $region51: #{smiles_net_forward.1} parent=0 // pred_check_branch
    %2057 = sbr.rel (0) target = $region53
  $region52: #{smiles_net_forward.1} parent=0 // pred_region
    _
  $region53: #{smiles_net_forward.1} parent=0 // pred_fallthru
    _
  // Predicated region
  $region54: #{smiles_net_forward.1} parent=0 // pred_check
    _
  $region55: #{smiles_net_forward.1} parent=0 // pred_check_branch
    %2059 = sbr.rel (0) target = $region57
  $region56: #{smiles_net_forward.1} parent=0 // pred_region
    _
  $region57: #{smiles_net_forward.1} parent=0 // pred_fallthru
    _

</llo_original>
